<compile_context>
chip_gen: v5e
topology: v5e:2x2
jax: 0.10.0
libtpu: 0.0.40
codegen_flags: <defaults>
</compile_context>

<pallas_src>
import math
import jax
import jax.numpy as jnp
from jax.experimental import pallas as pl
from jax.experimental.pallas import tpu as pltpu


def make_encoder_layer_kernel(n_heads, d_model, omega_attn, omega_ffn, ln_eps=1e-5):
    d_k = d_model // n_heads
    scale = d_k ** -0.5
    bf16 = jnp.bfloat16

    def kernel(src_ref, bias_ref,
               wqkv_ref, wp_ref, w1_ref, b1_ref, w2_ref, b2_ref,
               g1_ref, be1_ref, g2_ref, be2_ref,
               out_ref, attnw_ref,
               heads_ref):
        x = src_ref[0]            # (S, D)  f32
        bias = bias_ref[0]        # (S, S)  f32 additive mask: 0 or -inf (head-invariant)

        xb = x.astype(bf16)
        # Fused QKV projection: one big matmul, bf16 operands, f32 accumulation.
        qkv = jnp.dot(xb, wqkv_ref[...], preferred_element_type=jnp.float32)   # (S, 3D)

        # Static per-head loop (head h uses contiguous feature slice == torch split_heads).
        # Scores stay f32; per-head head_out is written into a VMEM scratch so the output
        # projection is a single (S, D) @ (D, D) matmul after the loop.
        for h in range(n_heads):
            q_h = qkv[:, h * d_k:(h + 1) * d_k]
            k_h = qkv[:, d_model + h * d_k: d_model + (h + 1) * d_k]
            v_h = qkv[:, 2 * d_model + h * d_k: 2 * d_model + (h + 1) * d_k]

            scores = jnp.dot(q_h, k_h.T, preferred_element_type=jnp.float32) * scale + bias
            m = jnp.max(scores, axis=-1, keepdims=True)
            p = jnp.exp(scores - m)
            denom = jnp.sum(p, axis=-1, keepdims=True)
            # exact reciprocal keeps NaN rows (fully masked queries) exactly like torch softmax
            w_raw = p * pl.reciprocal(denom, approx=False)
            attnw_ref[0, h, :, :] = w_raw                      # raw weights output (NaN rows kept)
            w = jnp.where(w_raw != w_raw, 0.0, w_raw)           # masked_fill(isnan, 0)
            head = jnp.dot(w.astype(bf16), v_h.astype(bf16),
                           preferred_element_type=jnp.float32)  # (S, d_k)
            heads_ref[:, h * d_k:(h + 1) * d_k] = head

        # Single output projection over the concatenated heads.
        proj = jnp.dot(heads_ref[...].astype(bf16), wp_ref[...],
                       preferred_element_type=jnp.float32)      # (S, D)

        # admin-style residual + LayerNorm 1 (f32)
        r1 = proj * omega_attn + x
        mean1 = jnp.mean(r1, axis=-1, keepdims=True)
        var1 = jnp.mean((r1 - mean1) ** 2, axis=-1, keepdims=True)
        sa = (r1 - mean1) * jax.lax.rsqrt(var1 + ln_eps) * g1_ref[...] + be1_ref[...]

        # FeedForward: Linear -> ReLU -> Linear (dropout identity), bf16 MXU / f32 accumulate
        h1 = jnp.maximum(
            jnp.dot(sa.astype(bf16), w1_ref[...], preferred_element_type=jnp.float32)
            + b1_ref[...], 0.0)
        f = (jnp.dot(h1.astype(bf16), w2_ref[...], preferred_element_type=jnp.float32)
             + b2_ref[...])

        # admin-style residual + LayerNorm 2 (f32)
        r2 = f * omega_ffn + sa
        mean2 = jnp.mean(r2, axis=-1, keepdims=True)
        var2 = jnp.mean((r2 - mean2) ** 2, axis=-1, keepdims=True)
        out_ref[0] = (r2 - mean2) * jax.lax.rsqrt(var2 + ln_eps) * g2_ref[...] + be2_ref[...]

    return kernel


def encoder_layer_forward(src, src_padding_mask, params, n_heads, masked):
    B, S, D = src.shape
    d_ff = params["w1"].shape[1]
    H = n_heads
    bf16 = jnp.bfloat16

    # Precompute one additive mask bias (0 / -inf): query-padding rows, kv-padding cols,
    # optional causal mask -- all head-invariant, fused once outside the kernel.
    pad = src_padding_mask
    bad = pad[:, :, None] | pad[:, None, :]
    if masked:
        bad = bad | jnp.triu(jnp.ones((S, S), dtype=bool), 1)[None]
    bias = jnp.where(bad, -jnp.inf, 0.0).astype(jnp.float32)    # (B, S, S)

    # Weights cast to bf16 at the call boundary (halves weight HBM/VMEM traffic);
    # QKV weights fused into one (D, 3D) matrix.
    wqkv = jnp.concatenate([params["wq"], params["wk"], params["wv"]], axis=1).astype(bf16)
    wp = params["wp"].astype(bf16)
    w1 = params["w1"].astype(bf16)
    w2 = params["w2"].astype(bf16)

    kernel = make_encoder_layer_kernel(H, D, params["omega_attn"], params["omega_ffn"])

    def full(shape):
        n = len(shape)
        return pl.BlockSpec(shape, lambda b, _n=n: (0,) * _n)

    in_specs = [
        pl.BlockSpec((1, S, D), lambda b: (b, 0, 0)),      # src
        pl.BlockSpec((1, S, S), lambda b: (b, 0, 0)),      # additive mask bias
        full((D, 3 * D)),                                  # Wqkv (bf16)
        full((D, D)),                                      # Wproj (bf16)
        full((D, d_ff)), full((1, d_ff)),                  # W1 (bf16), b1 (f32)
        full((d_ff, D)), full((1, D)),                     # W2 (bf16), b2 (f32)
        full((1, D)), full((1, D)), full((1, D)), full((1, D)),   # ln1/ln2 gamma/beta
    ]
    out_specs = [
        pl.BlockSpec((1, S, D), lambda b: (b, 0, 0)),
        pl.BlockSpec((1, H, S, S), lambda b: (b, 0, 0, 0)),
    ]
    out_shape = [
        jax.ShapeDtypeStruct((B, S, D), jnp.float32),
        jax.ShapeDtypeStruct((B, H, S, S), jnp.float32),
    ]

    return pl.pallas_call(
        kernel,
        grid=(B,),
        in_specs=in_specs,
        out_specs=out_specs,
        out_shape=out_shape,
        scratch_shapes=[pltpu.VMEM((S, D), jnp.float32)],   # concatenated head outputs
        compiler_params=pltpu.CompilerParams(
            dimension_semantics=("parallel",),               # 2 steps -> both v7x TensorCores
            vmem_limit_bytes=64 * 1024 * 1024,
        ),
    )(src, bias, wqkv, wp, w1, params["b1"], w2, params["b2"],
      params["g1"], params["be1"], params["g2"], params["be2"])


# ---------------- pure-JAX reference (mirrors the torch forward) ----------------
# mirror_kernel_precision=True replicates the kernel's bf16 matmul-operand casts
# (f32 accumulation, f32 softmax/LN) so tight tolerances remain meaningful;
# False gives the plain f32 reference for a loose sanity check.
def encoder_layer_ref(src, mask, p, n_heads, masked, eps=1e-5, mirror_kernel_precision=True):
    B, S, D = src.shape
    H, dk = n_heads, D // n_heads
    f32 = jnp.float32
    cast = (lambda a: a.astype(jnp.bfloat16)) if mirror_kernel_precision else (lambda a: a)

    def mm(a, b):
        return jnp.einsum("...ij,jk->...ik", cast(a), cast(b), preferred_element_type=f32)

    def split(x):
        return x.reshape(B, S, H, dk).transpose(0, 2, 1, 3)

    q, k, v = split(mm(src, p["wq"])), split(mm(src, p["wk"])), split(mm(src, p["wv"]))
    s = jnp.einsum("bhqd,bhkd->bhqk", q, k, preferred_element_type=f32) * dk ** -0.5
    s = jnp.where(mask[:, None, :, None], -jnp.inf, s)   # query padding mask (rows)
    s = jnp.where(mask[:, None, None, :], -jnp.inf, s)   # kv padding mask (cols)
    if masked:
        s = jnp.where(jnp.triu(jnp.ones((S, S), bool), 1), -jnp.inf, s)
    m = jnp.max(s, -1, keepdims=True)
    e = jnp.exp(s - m)
    w_raw = e / jnp.sum(e, -1, keepdims=True)
    w = jnp.where(jnp.isnan(w_raw), 0.0, w_raw)
    attn = jnp.einsum("bhqk,bhkd->bhqd", cast(w), cast(v), preferred_element_type=f32)
    attn = attn.transpose(0, 2, 1, 3).reshape(B, S, D)
    attn = mm(attn, p["wp"])

    def ln(x, g, b):
        mu = jnp.mean(x, -1, keepdims=True)
        var = jnp.mean((x - mu) ** 2, -1, keepdims=True)
        return (x - mu) * jax.lax.rsqrt(var + eps) * g + b

    sa = ln(attn * p["omega_attn"] + src, p["g1"], p["be1"])
    h1 = jnp.maximum(mm(sa, p["w1"]) + p["b1"], 0.0)
    f = mm(h1, p["w2"]) + p["b2"]
    out = ln(f * p["omega_ffn"] + sa, p["g2"], p["be2"])
    return out, w_raw


if __name__ == "__main__":
    B, S, d_model, n_heads, d_ff, n_layers = 2, 8, 32, 4, 64, 2
    masked = False  # encoder self-attention; dropout ignored (eval mode)

    key = jax.random.PRNGKey(0)
    ks = jax.random.split(key, 10)
    rnd = lambda k, shp, s=0.1: (jax.random.normal(k, shp, jnp.float32) * s)

    # TODO(synk): admin_torch omega init constant approximated as sqrt(2 * n_layers)
    omega = float(math.sqrt(2 * n_layers))
    params = {
        "wq": rnd(ks[0], (d_model, d_model)),
        "wk": rnd(ks[1], (d_model, d_model)),
        "wv": rnd(ks[2], (d_model, d_model)),
        "wp": rnd(ks[3], (d_model, d_model)),
        "w1": rnd(ks[4], (d_model, d_ff)),
        "b1": rnd(ks[5], (1, d_ff)),
        "w2": rnd(ks[6], (d_ff, d_model)),
        "b2": rnd(ks[7], (1, d_model)),
        "g1": jnp.ones((1, d_model), jnp.float32),
        "be1": jnp.zeros((1, d_model), jnp.float32),
        "g2": jnp.ones((1, d_model), jnp.float32),
        "be2": jnp.zeros((1, d_model), jnp.float32),
        "omega_attn": omega,
        "omega_ffn": omega,
    }

    src = jax.random.normal(ks[8], (B, S, d_model), jnp.float32)
    # padding mask: True = padded position (batch 0 has last 2 tokens padded)
    src_padding_mask = jnp.zeros((B, S), bool).at[0, S - 2:].set(True)

    out, attn_w = encoder_layer_forward(src, src_padding_mask, params, n_heads, masked)
    out = jax.block_until_ready(out)
    attn_w = jax.block_until_ready(attn_w)
    assert out.shape == (B, S, d_model) and attn_w.shape == (B, n_heads, S, S)

    # Tight check against the precision-mirrored reference.
    out_m, attnw_m = encoder_layer_ref(src, src_padding_mask, params, n_heads, masked,
                                       mirror_kernel_precision=True)
    assert jnp.allclose(out, out_m, atol=2e-4, rtol=2e-4)
    assert jnp.allclose(attn_w, attnw_m, atol=2e-5, rtol=2e-5, equal_nan=True)

    # Loose sanity check against pure-f32 math (bounds the bf16 MXU error).
    out_f, attnw_f = encoder_layer_ref(src, src_padding_mask, params, n_heads, masked,
                                       mirror_kernel_precision=False)
    assert jnp.allclose(out, out_f, atol=5e-2, rtol=5e-2)
    assert jnp.allclose(attn_w, attnw_f, atol=2e-2, rtol=2e-2, equal_nan=True)

    print("KERNEL_OK")
</pallas_src>

<mosaic_0001>
module attributes {stable_mosaic.version = 11 : i64} {
  func.func @kernel(%arg0: i32, %arg1: memref<1x8x32xf32, #tpu.memory_space<vmem>>, %arg2: memref<1x8x8xf32, #tpu.memory_space<vmem>>, %arg3: memref<32x96xbf16, #tpu.memory_space<vmem>>, %arg4: memref<32x32xbf16, #tpu.memory_space<vmem>>, %arg5: memref<32x64xbf16, #tpu.memory_space<vmem>>, %arg6: memref<1x64xf32, #tpu.memory_space<vmem>>, %arg7: memref<64x32xbf16, #tpu.memory_space<vmem>>, %arg8: memref<1x32xf32, #tpu.memory_space<vmem>>, %arg9: memref<1x32xf32, #tpu.memory_space<vmem>>, %arg10: memref<1x32xf32, #tpu.memory_space<vmem>>, %arg11: memref<1x32xf32, #tpu.memory_space<vmem>>, %arg12: memref<1x32xf32, #tpu.memory_space<vmem>>, %arg13: memref<1x8x32xf32, #tpu.memory_space<vmem>>, %arg14: memref<1x4x8x8xf32, #tpu.memory_space<vmem>>, %arg15: memref<8x32xf32, #tpu.memory_space<vmem>>) attributes {dimension_semantics = [#tpu.dimension_semantics<parallel>], iteration_bounds = array<i64: 2>, scalar_prefetch = 0 : i64, scratch_operands = 1 : i64, tpu.core_type = #tpu.core_type<tc>, window_params = [{transform_indices = @transform_0, window_bounds = array<i64: 1, 8, 32>}, {transform_indices = @transform_1, window_bounds = array<i64: 1, 8, 8>}, {pipeline_mode = #tpu.pipeline_mode<synchronous>, transform_indices = @transform_2, window_bounds = array<i64: 32, 96>}, {pipeline_mode = #tpu.pipeline_mode<synchronous>, transform_indices = @transform_3, window_bounds = array<i64: 32, 32>}, {pipeline_mode = #tpu.pipeline_mode<synchronous>, transform_indices = @transform_4, window_bounds = array<i64: 32, 64>}, {pipeline_mode = #tpu.pipeline_mode<synchronous>, transform_indices = @transform_5, window_bounds = array<i64: 1, 64>}, {pipeline_mode = #tpu.pipeline_mode<synchronous>, transform_indices = @transform_6, window_bounds = array<i64: 64, 32>}, {pipeline_mode = #tpu.pipeline_mode<synchronous>, transform_indices = @transform_7, window_bounds = array<i64: 1, 32>}, {pipeline_mode = #tpu.pipeline_mode<synchronous>, transform_indices = @transform_8, window_bounds = array<i64: 1, 32>}, {pipeline_mode = #tpu.pipeline_mode<synchronous>, transform_indices = @transform_9, window_bounds = array<i64: 1, 32>}, {pipeline_mode = #tpu.pipeline_mode<synchronous>, transform_indices = @transform_10, window_bounds = array<i64: 1, 32>}, {pipeline_mode = #tpu.pipeline_mode<synchronous>, transform_indices = @transform_11, window_bounds = array<i64: 1, 32>}, {transform_indices = @transform_12, window_bounds = array<i64: 1, 8, 32>}, {transform_indices = @transform_13, window_bounds = array<i64: 1, 4, 8, 8>}]} {
    %c0 = arith.constant 0 : index
    %c0_0 = arith.constant 0 : index
    %c0_1 = arith.constant 0 : index
    %0 = vector.load %arg1[%c0, %c0_0, %c0_1] : memref<1x8x32xf32, #tpu.memory_space<vmem>>, vector<1x8x32xf32>
    %1 = vector.shape_cast %0 : vector<1x8x32xf32> to vector<8x32xf32>
    %c0_2 = arith.constant 0 : index
    %c0_3 = arith.constant 0 : index
    %c0_4 = arith.constant 0 : index
    %2 = vector.load %arg2[%c0_2, %c0_3, %c0_4] : memref<1x8x8xf32, #tpu.memory_space<vmem>>, vector<1x8x8xf32>
    %3 = vector.shape_cast %2 : vector<1x8x8xf32> to vector<8x8xf32>
    %4 = arith.truncf %1 : vector<8x32xf32> to vector<8x32xbf16>
    %c0_5 = arith.constant 0 : index
    %c0_6 = arith.constant 0 : index
    %5 = vector.load %arg3[%c0_5, %c0_6] : memref<32x96xbf16, #tpu.memory_space<vmem>>, vector<32x96xbf16>
    %cst = arith.constant dense<0.000000e+00> : vector<8x96xf32>
    %6 = tpu.matmul %4, %5, %cst {dimension_numbers = #tpu.dot_dimension_numbers<[1], [0], [0], [1], [0, 0, 1, 1], [], []>} : vector<8x32xbf16>, vector<32x96xbf16>, vector<8x96xf32> -> vector<8x96xf32>
    %7 = vector.extract_strided_slice %6 {offsets = [0, 0], sizes = [8, 8], strides = [1, 1]} : vector<8x96xf32> to vector<8x8xf32>
    %8 = vector.extract_strided_slice %6 {offsets = [0, 32], sizes = [8, 8], strides = [1, 1]} : vector<8x96xf32> to vector<8x8xf32>
    %9 = vector.extract_strided_slice %6 {offsets = [0, 64], sizes = [8, 8], strides = [1, 1]} : vector<8x96xf32> to vector<8x8xf32>
    %10 = tpu.transpose %8, [1, 0] : vector<8x8xf32> -> vector<8x8xf32>
    %cst_7 = arith.constant dense<0.000000e+00> : vector<8x8xf32>
    %11 = tpu.matmul %7, %10, %cst_7 {dimension_numbers = #tpu.dot_dimension_numbers<[1], [0], [0], [1], [0, 0, 1, 1], [], []>} : vector<8x8xf32>, vector<8x8xf32>, vector<8x8xf32> -> vector<8x8xf32>
    %cst_8 = arith.constant 0.353553385 : f32
    %12 = vector.broadcast %cst_8 : f32 to vector<8x8xf32>
    %13 = arith.mulf %11, %12 : vector<8x8xf32>
    %14 = arith.addf %13, %3 : vector<8x8xf32>
    %cst_9 = arith.constant dense<0xFF800000> : vector<8xf32>
    %15 = vector.multi_reduction <maximumf>, %14, %cst_9 [1] : vector<8x8xf32> to vector<8xf32>
    %16 = vector.shape_cast %15 : vector<8xf32> to vector<8x1xf32>
    %17 = vector.broadcast %16 : vector<8x1xf32> to vector<8x8xf32>
    %18 = arith.subf %14, %17 : vector<8x8xf32>
    %19 = math.exp %18 : vector<8x8xf32>
    %cst_10 = arith.constant dense<0.000000e+00> : vector<8xf32>
    %20 = vector.multi_reduction <add>, %19, %cst_10 [1] : vector<8x8xf32> to vector<8xf32>
    %21 = vector.shape_cast %20 : vector<8xf32> to vector<8x1xf32>
    %22 = tpu.reciprocal %21 : vector<8x1xf32> -> vector<8x1xf32>
    %23 = vector.broadcast %22 : vector<8x1xf32> to vector<8x8xf32>
    %24 = arith.mulf %19, %23 : vector<8x8xf32>
    %c0_11 = arith.constant 0 : index
    %c0_12 = arith.constant 0 : index
    %c0_13 = arith.constant 0 : index
    %c0_14 = arith.constant 0 : index
    %25 = vector.load %arg14[%c0_11, %c0_12, %c0_13, %c0_14] : memref<1x4x8x8xf32, #tpu.memory_space<vmem>>, vector<1x1x8x8xf32>
    %26 = vector.shape_cast %25 : vector<1x1x8x8xf32> to vector<8x8xf32>
    %27 = vector.shape_cast %24 : vector<8x8xf32> to vector<1x1x8x8xf32>
    tpu.vector_store %arg14[%c0_11, %c0_12, %c0_13, %c0_14], %27 {strides = array<i32>} : memref<1x4x8x8xf32, #tpu.memory_space<vmem>>, vector<1x1x8x8xf32>,
    %28 = arith.cmpf one, %24, %24 : vector<8x8xf32>
    %cst_15 = arith.constant 0.000000e+00 : f32
    %29 = vector.broadcast %cst_15 : f32 to vector<8x8xf32>
    %30 = arith.select %28, %29, %24 : vector<8x8xi1>, vector<8x8xf32>
    %31 = arith.truncf %30 : vector<8x8xf32> to vector<8x8xbf16>
    %32 = arith.truncf %9 : vector<8x8xf32> to vector<8x8xbf16>
    %cst_16 = arith.constant dense<0.000000e+00> : vector<8x8xf32>
    %33 = tpu.matmul %31, %32, %cst_16 {dimension_numbers = #tpu.dot_dimension_numbers<[1], [0], [0], [1], [0, 0, 1, 1], [], []>} : vector<8x8xbf16>, vector<8x8xbf16>, vector<8x8xf32> -> vector<8x8xf32>
    %c0_17 = arith.constant 0 : index
    %c0_18 = arith.constant 0 : index
    %34 = vector.load %arg15[%c0_17, %c0_18] : memref<8x32xf32, #tpu.memory_space<vmem>>, vector<8x8xf32>
    tpu.vector_store %arg15[%c0_17, %c0_18], %33 {strides = array<i32>} : memref<8x32xf32, #tpu.memory_space<vmem>>, vector<8x8xf32>,
    %35 = vector.extract_strided_slice %6 {offsets = [0, 8], sizes = [8, 8], strides = [1, 1]} : vector<8x96xf32> to vector<8x8xf32>
    %36 = vector.extract_strided_slice %6 {offsets = [0, 40], sizes = [8, 8], strides = [1, 1]} : vector<8x96xf32> to vector<8x8xf32>
    %37 = vector.extract_strided_slice %6 {offsets = [0, 72], sizes = [8, 8], strides = [1, 1]} : vector<8x96xf32> to vector<8x8xf32>
    %38 = tpu.transpose %36, [1, 0] : vector<8x8xf32> -> vector<8x8xf32>
    %cst_19 = arith.constant dense<0.000000e+00> : vector<8x8xf32>
    %39 = tpu.matmul %35, %38, %cst_19 {dimension_numbers = #tpu.dot_dimension_numbers<[1], [0], [0], [1], [0, 0, 1, 1], [], []>} : vector<8x8xf32>, vector<8x8xf32>, vector<8x8xf32> -> vector<8x8xf32>
    %cst_20 = arith.constant 0.353553385 : f32
    %40 = vector.broadcast %cst_20 : f32 to vector<8x8xf32>
    %41 = arith.mulf %39, %40 : vector<8x8xf32>
    %42 = arith.addf %41, %3 : vector<8x8xf32>
    %cst_21 = arith.constant dense<0xFF800000> : vector<8xf32>
    %43 = vector.multi_reduction <maximumf>, %42, %cst_21 [1] : vector<8x8xf32> to vector<8xf32>
    %44 = vector.shape_cast %43 : vector<8xf32> to vector<8x1xf32>
    %45 = vector.broadcast %44 : vector<8x1xf32> to vector<8x8xf32>
    %46 = arith.subf %42, %45 : vector<8x8xf32>
    %47 = math.exp %46 : vector<8x8xf32>
    %cst_22 = arith.constant dense<0.000000e+00> : vector<8xf32>
    %48 = vector.multi_reduction <add>, %47, %cst_22 [1] : vector<8x8xf32> to vector<8xf32>
    %49 = vector.shape_cast %48 : vector<8xf32> to vector<8x1xf32>
    %50 = tpu.reciprocal %49 : vector<8x1xf32> -> vector<8x1xf32>
    %51 = vector.broadcast %50 : vector<8x1xf32> to vector<8x8xf32>
    %52 = arith.mulf %47, %51 : vector<8x8xf32>
    %c0_23 = arith.constant 0 : index
    %c1 = arith.constant 1 : index
    %c0_24 = arith.constant 0 : index
    %c0_25 = arith.constant 0 : index
    %53 = vector.load %arg14[%c0_23, %c1, %c0_24, %c0_25] : memref<1x4x8x8xf32, #tpu.memory_space<vmem>>, vector<1x1x8x8xf32>
    %54 = vector.shape_cast %53 : vector<1x1x8x8xf32> to vector<8x8xf32>
    %55 = vector.shape_cast %52 : vector<8x8xf32> to vector<1x1x8x8xf32>
    tpu.vector_store %arg14[%c0_23, %c1, %c0_24, %c0_25], %55 {strides = array<i32>} : memref<1x4x8x8xf32, #tpu.memory_space<vmem>>, vector<1x1x8x8xf32>,
    %56 = arith.cmpf one, %52, %52 : vector<8x8xf32>
    %cst_26 = arith.constant 0.000000e+00 : f32
    %57 = vector.broadcast %cst_26 : f32 to vector<8x8xf32>
    %58 = arith.select %56, %57, %52 : vector<8x8xi1>, vector<8x8xf32>
    %59 = arith.truncf %58 : vector<8x8xf32> to vector<8x8xbf16>
    %60 = arith.truncf %37 : vector<8x8xf32> to vector<8x8xbf16>
    %cst_27 = arith.constant dense<0.000000e+00> : vector<8x8xf32>
    %61 = tpu.matmul %59, %60, %cst_27 {dimension_numbers = #tpu.dot_dimension_numbers<[1], [0], [0], [1], [0, 0, 1, 1], [], []>} : vector<8x8xbf16>, vector<8x8xbf16>, vector<8x8xf32> -> vector<8x8xf32>
    %c0_28 = arith.constant 0 : index
    %c8 = arith.constant 8 : index
    %62 = vector.load %arg15[%c0_28, %c8] : memref<8x32xf32, #tpu.memory_space<vmem>>, vector<8x8xf32>
    tpu.vector_store %arg15[%c0_28, %c8], %61 {strides = array<i32>} : memref<8x32xf32, #tpu.memory_space<vmem>>, vector<8x8xf32>,
    %63 = vector.extract_strided_slice %6 {offsets = [0, 16], sizes = [8, 8], strides = [1, 1]} : vector<8x96xf32> to vector<8x8xf32>
    %64 = vector.extract_strided_slice %6 {offsets = [0, 48], sizes = [8, 8], strides = [1, 1]} : vector<8x96xf32> to vector<8x8xf32>
    %65 = vector.extract_strided_slice %6 {offsets = [0, 80], sizes = [8, 8], strides = [1, 1]} : vector<8x96xf32> to vector<8x8xf32>
    %66 = tpu.transpose %64, [1, 0] : vector<8x8xf32> -> vector<8x8xf32>
    %cst_29 = arith.constant dense<0.000000e+00> : vector<8x8xf32>
    %67 = tpu.matmul %63, %66, %cst_29 {dimension_numbers = #tpu.dot_dimension_numbers<[1], [0], [0], [1], [0, 0, 1, 1], [], []>} : vector<8x8xf32>, vector<8x8xf32>, vector<8x8xf32> -> vector<8x8xf32>
    %cst_30 = arith.constant 0.353553385 : f32
    %68 = vector.broadcast %cst_30 : f32 to vector<8x8xf32>
    %69 = arith.mulf %67, %68 : vector<8x8xf32>
    %70 = arith.addf %69, %3 : vector<8x8xf32>
    %cst_31 = arith.constant dense<0xFF800000> : vector<8xf32>
    %71 = vector.multi_reduction <maximumf>, %70, %cst_31 [1] : vector<8x8xf32> to vector<8xf32>
    %72 = vector.shape_cast %71 : vector<8xf32> to vector<8x1xf32>
    %73 = vector.broadcast %72 : vector<8x1xf32> to vector<8x8xf32>
    %74 = arith.subf %70, %73 : vector<8x8xf32>
    %75 = math.exp %74 : vector<8x8xf32>
    %cst_32 = arith.constant dense<0.000000e+00> : vector<8xf32>
    %76 = vector.multi_reduction <add>, %75, %cst_32 [1] : vector<8x8xf32> to vector<8xf32>
    %77 = vector.shape_cast %76 : vector<8xf32> to vector<8x1xf32>
    %78 = tpu.reciprocal %77 : vector<8x1xf32> -> vector<8x1xf32>
    %79 = vector.broadcast %78 : vector<8x1xf32> to vector<8x8xf32>
    %80 = arith.mulf %75, %79 : vector<8x8xf32>
    %c0_33 = arith.constant 0 : index
    %c2 = arith.constant 2 : index
    %c0_34 = arith.constant 0 : index
    %c0_35 = arith.constant 0 : index
    %81 = vector.load %arg14[%c0_33, %c2, %c0_34, %c0_35] : memref<1x4x8x8xf32, #tpu.memory_space<vmem>>, vector<1x1x8x8xf32>
    %82 = vector.shape_cast %81 : vector<1x1x8x8xf32> to vector<8x8xf32>
    %83 = vector.shape_cast %80 : vector<8x8xf32> to vector<1x1x8x8xf32>
    tpu.vector_store %arg14[%c0_33, %c2, %c0_34, %c0_35], %83 {strides = array<i32>} : memref<1x4x8x8xf32, #tpu.memory_space<vmem>>, vector<1x1x8x8xf32>,
    %84 = arith.cmpf one, %80, %80 : vector<8x8xf32>
    %cst_36 = arith.constant 0.000000e+00 : f32
    %85 = vector.broadcast %cst_36 : f32 to vector<8x8xf32>
    %86 = arith.select %84, %85, %80 : vector<8x8xi1>, vector<8x8xf32>
    %87 = arith.truncf %86 : vector<8x8xf32> to vector<8x8xbf16>
    %88 = arith.truncf %65 : vector<8x8xf32> to vector<8x8xbf16>
    %cst_37 = arith.constant dense<0.000000e+00> : vector<8x8xf32>
    %89 = tpu.matmul %87, %88, %cst_37 {dimension_numbers = #tpu.dot_dimension_numbers<[1], [0], [0], [1], [0, 0, 1, 1], [], []>} : vector<8x8xbf16>, vector<8x8xbf16>, vector<8x8xf32> -> vector<8x8xf32>
    %c0_38 = arith.constant 0 : index
    %c16 = arith.constant 16 : index
    %90 = vector.load %arg15[%c0_38, %c16] : memref<8x32xf32, #tpu.memory_space<vmem>>, vector<8x8xf32>
    tpu.vector_store %arg15[%c0_38, %c16], %89 {strides = array<i32>} : memref<8x32xf32, #tpu.memory_space<vmem>>, vector<8x8xf32>,
    %91 = vector.extract_strided_slice %6 {offsets = [0, 24], sizes = [8, 8], strides = [1, 1]} : vector<8x96xf32> to vector<8x8xf32>
    %92 = vector.extract_strided_slice %6 {offsets = [0, 56], sizes = [8, 8], strides = [1, 1]} : vector<8x96xf32> to vector<8x8xf32>
    %93 = vector.extract_strided_slice %6 {offsets = [0, 88], sizes = [8, 8], strides = [1, 1]} : vector<8x96xf32> to vector<8x8xf32>
    %94 = tpu.transpose %92, [1, 0] : vector<8x8xf32> -> vector<8x8xf32>
    %cst_39 = arith.constant dense<0.000000e+00> : vector<8x8xf32>
    %95 = tpu.matmul %91, %94, %cst_39 {dimension_numbers = #tpu.dot_dimension_numbers<[1], [0], [0], [1], [0, 0, 1, 1], [], []>} : vector<8x8xf32>, vector<8x8xf32>, vector<8x8xf32> -> vector<8x8xf32>
    %cst_40 = arith.constant 0.353553385 : f32
    %96 = vector.broadcast %cst_40 : f32 to vector<8x8xf32>
    %97 = arith.mulf %95, %96 : vector<8x8xf32>
    %98 = arith.addf %97, %3 : vector<8x8xf32>
    %cst_41 = arith.constant dense<0xFF800000> : vector<8xf32>
    %99 = vector.multi_reduction <maximumf>, %98, %cst_41 [1] : vector<8x8xf32> to vector<8xf32>
    %100 = vector.shape_cast %99 : vector<8xf32> to vector<8x1xf32>
    %101 = vector.broadcast %100 : vector<8x1xf32> to vector<8x8xf32>
    %102 = arith.subf %98, %101 : vector<8x8xf32>
    %103 = math.exp %102 : vector<8x8xf32>
    %cst_42 = arith.constant dense<0.000000e+00> : vector<8xf32>
    %104 = vector.multi_reduction <add>, %103, %cst_42 [1] : vector<8x8xf32> to vector<8xf32>
    %105 = vector.shape_cast %104 : vector<8xf32> to vector<8x1xf32>
    %106 = tpu.reciprocal %105 : vector<8x1xf32> -> vector<8x1xf32>
    %107 = vector.broadcast %106 : vector<8x1xf32> to vector<8x8xf32>
    %108 = arith.mulf %103, %107 : vector<8x8xf32>
    %c0_43 = arith.constant 0 : index
    %c3 = arith.constant 3 : index
    %c0_44 = arith.constant 0 : index
    %c0_45 = arith.constant 0 : index
    %109 = vector.load %arg14[%c0_43, %c3, %c0_44, %c0_45] : memref<1x4x8x8xf32, #tpu.memory_space<vmem>>, vector<1x1x8x8xf32>
    %110 = vector.shape_cast %109 : vector<1x1x8x8xf32> to vector<8x8xf32>
    %111 = vector.shape_cast %108 : vector<8x8xf32> to vector<1x1x8x8xf32>
    tpu.vector_store %arg14[%c0_43, %c3, %c0_44, %c0_45], %111 {strides = array<i32>} : memref<1x4x8x8xf32, #tpu.memory_space<vmem>>, vector<1x1x8x8xf32>,
    %112 = arith.cmpf one, %108, %108 : vector<8x8xf32>
    %cst_46 = arith.constant 0.000000e+00 : f32
    %113 = vector.broadcast %cst_46 : f32 to vector<8x8xf32>
    %114 = arith.select %112, %113, %108 : vector<8x8xi1>, vector<8x8xf32>
    %115 = arith.truncf %114 : vector<8x8xf32> to vector<8x8xbf16>
    %116 = arith.truncf %93 : vector<8x8xf32> to vector<8x8xbf16>
    %cst_47 = arith.constant dense<0.000000e+00> : vector<8x8xf32>
    %117 = tpu.matmul %115, %116, %cst_47 {dimension_numbers = #tpu.dot_dimension_numbers<[1], [0], [0], [1], [0, 0, 1, 1], [], []>} : vector<8x8xbf16>, vector<8x8xbf16>, vector<8x8xf32> -> vector<8x8xf32>
    %c0_48 = arith.constant 0 : index
    %c24 = arith.constant 24 : index
    %118 = vector.load %arg15[%c0_48, %c24] : memref<8x32xf32, #tpu.memory_space<vmem>>, vector<8x8xf32>
    tpu.vector_store %arg15[%c0_48, %c24], %117 {strides = array<i32>} : memref<8x32xf32, #tpu.memory_space<vmem>>, vector<8x8xf32>,
    %c0_49 = arith.constant 0 : index
    %c0_50 = arith.constant 0 : index
    %119 = vector.load %arg15[%c0_49, %c0_50] : memref<8x32xf32, #tpu.memory_space<vmem>>, vector<8x32xf32>
    %120 = arith.truncf %119 : vector<8x32xf32> to vector<8x32xbf16>
    %c0_51 = arith.constant 0 : index
    %c0_52 = arith.constant 0 : index
    %121 = vector.load %arg4[%c0_51, %c0_52] : memref<32x32xbf16, #tpu.memory_space<vmem>>, vector<32x32xbf16>
    %cst_53 = arith.constant dense<0.000000e+00> : vector<8x32xf32>
    %122 = tpu.matmul %120, %121, %cst_53 {dimension_numbers = #tpu.dot_dimension_numbers<[1], [0], [0], [1], [0, 0, 1, 1], [], []>} : vector<8x32xbf16>, vector<32x32xbf16>, vector<8x32xf32> -> vector<8x32xf32>
    %cst_54 = arith.constant 2.000000e+00 : f32
    %123 = vector.broadcast %cst_54 : f32 to vector<8x32xf32>
    %124 = arith.mulf %122, %123 : vector<8x32xf32>
    %125 = arith.addf %124, %1 : vector<8x32xf32>
    %cst_55 = arith.constant dense<0.000000e+00> : vector<8xf32>
    %126 = vector.multi_reduction <add>, %125, %cst_55 [1] : vector<8x32xf32> to vector<8xf32>
    %127 = vector.shape_cast %126 : vector<8xf32> to vector<8x1xf32>
    %cst_56 = arith.constant 3.200000e+01 : f32
    %128 = vector.broadcast %cst_56 : f32 to vector<8x1xf32>
    %129 = arith.divf %127, %128 : vector<8x1xf32>
    %130 = vector.broadcast %129 : vector<8x1xf32> to vector<8x32xf32>
    %131 = arith.subf %125, %130 : vector<8x32xf32>
    %132 = arith.mulf %131, %131 : vector<8x32xf32>
    %cst_57 = arith.constant dense<0.000000e+00> : vector<8xf32>
    %133 = vector.multi_reduction <add>, %132, %cst_57 [1] : vector<8x32xf32> to vector<8xf32>
    %134 = vector.shape_cast %133 : vector<8xf32> to vector<8x1xf32>
    %cst_58 = arith.constant 3.200000e+01 : f32
    %135 = vector.broadcast %cst_58 : f32 to vector<8x1xf32>
    %136 = arith.divf %134, %135 : vector<8x1xf32>
    %137 = vector.broadcast %129 : vector<8x1xf32> to vector<8x32xf32>
    %138 = arith.subf %125, %137 : vector<8x32xf32>
    %cst_59 = arith.constant 9.99999974E-6 : f32
    %139 = vector.broadcast %cst_59 : f32 to vector<8x1xf32>
    %140 = arith.addf %136, %139 : vector<8x1xf32>
    %141 = math.rsqrt %140 : vector<8x1xf32>
    %142 = vector.broadcast %141 : vector<8x1xf32> to vector<8x32xf32>
    %143 = arith.mulf %138, %142 : vector<8x32xf32>
    %c0_60 = arith.constant 0 : index
    %c0_61 = arith.constant 0 : index
    %144 = vector.load %arg9[%c0_60, %c0_61] : memref<1x32xf32, #tpu.memory_space<vmem>>, vector<1x32xf32>
    %145 = vector.broadcast %144 : vector<1x32xf32> to vector<8x32xf32>
    %146 = arith.mulf %143, %145 : vector<8x32xf32>
    %c0_62 = arith.constant 0 : index
    %c0_63 = arith.constant 0 : index
    %147 = vector.load %arg10[%c0_62, %c0_63] : memref<1x32xf32, #tpu.memory_space<vmem>>, vector<1x32xf32>
    %148 = vector.broadcast %147 : vector<1x32xf32> to vector<8x32xf32>
    %149 = arith.addf %146, %148 : vector<8x32xf32>
    %150 = arith.truncf %149 : vector<8x32xf32> to vector<8x32xbf16>
    %c0_64 = arith.constant 0 : index
    %c0_65 = arith.constant 0 : index
    %151 = vector.load %arg5[%c0_64, %c0_65] : memref<32x64xbf16, #tpu.memory_space<vmem>>, vector<32x64xbf16>
    %cst_66 = arith.constant dense<0.000000e+00> : vector<8x64xf32>
    %152 = tpu.matmul %150, %151, %cst_66 {dimension_numbers = #tpu.dot_dimension_numbers<[1], [0], [0], [1], [0, 0, 1, 1], [], []>} : vector<8x32xbf16>, vector<32x64xbf16>, vector<8x64xf32> -> vector<8x64xf32>
    %c0_67 = arith.constant 0 : index
    %c0_68 = arith.constant 0 : index
    %153 = vector.load %arg6[%c0_67, %c0_68] : memref<1x64xf32, #tpu.memory_space<vmem>>, vector<1x64xf32>
    %154 = vector.broadcast %153 : vector<1x64xf32> to vector<8x64xf32>
    %155 = arith.addf %152, %154 : vector<8x64xf32>
    %cst_69 = arith.constant 0.000000e+00 : f32
    %156 = vector.broadcast %cst_69 : f32 to vector<8x64xf32>
    %157 = arith.maximumf %155, %156 : vector<8x64xf32>
    %158 = arith.truncf %157 : vector<8x64xf32> to vector<8x64xbf16>
    %c0_70 = arith.constant 0 : index
    %c0_71 = arith.constant 0 : index
    %159 = vector.load %arg7[%c0_70, %c0_71] : memref<64x32xbf16, #tpu.memory_space<vmem>>, vector<64x32xbf16>
    %cst_72 = arith.constant dense<0.000000e+00> : vector<8x32xf32>
    %160 = tpu.matmul %158, %159, %cst_72 {dimension_numbers = #tpu.dot_dimension_numbers<[1], [0], [0], [1], [0, 0, 1, 1], [], []>} : vector<8x64xbf16>, vector<64x32xbf16>, vector<8x32xf32> -> vector<8x32xf32>
    %c0_73 = arith.constant 0 : index
    %c0_74 = arith.constant 0 : index
    %161 = vector.load %arg8[%c0_73, %c0_74] : memref<1x32xf32, #tpu.memory_space<vmem>>, vector<1x32xf32>
    %162 = vector.broadcast %161 : vector<1x32xf32> to vector<8x32xf32>
    %163 = arith.addf %160, %162 : vector<8x32xf32>
    %cst_75 = arith.constant 2.000000e+00 : f32
    %164 = vector.broadcast %cst_75 : f32 to vector<8x32xf32>
    %165 = arith.mulf %163, %164 : vector<8x32xf32>
    %166 = arith.addf %165, %149 : vector<8x32xf32>
    %cst_76 = arith.constant dense<0.000000e+00> : vector<8xf32>
    %167 = vector.multi_reduction <add>, %166, %cst_76 [1] : vector<8x32xf32> to vector<8xf32>
    %168 = vector.shape_cast %167 : vector<8xf32> to vector<8x1xf32>
    %cst_77 = arith.constant 3.200000e+01 : f32
    %169 = vector.broadcast %cst_77 : f32 to vector<8x1xf32>
    %170 = arith.divf %168, %169 : vector<8x1xf32>
    %171 = vector.broadcast %170 : vector<8x1xf32> to vector<8x32xf32>
    %172 = arith.subf %166, %171 : vector<8x32xf32>
    %173 = arith.mulf %172, %172 : vector<8x32xf32>
    %cst_78 = arith.constant dense<0.000000e+00> : vector<8xf32>
    %174 = vector.multi_reduction <add>, %173, %cst_78 [1] : vector<8x32xf32> to vector<8xf32>
    %175 = vector.shape_cast %174 : vector<8xf32> to vector<8x1xf32>
    %cst_79 = arith.constant 3.200000e+01 : f32
    %176 = vector.broadcast %cst_79 : f32 to vector<8x1xf32>
    %177 = arith.divf %175, %176 : vector<8x1xf32>
    %178 = vector.broadcast %170 : vector<8x1xf32> to vector<8x32xf32>
    %179 = arith.subf %166, %178 : vector<8x32xf32>
    %cst_80 = arith.constant 9.99999974E-6 : f32
    %180 = vector.broadcast %cst_80 : f32 to vector<8x1xf32>
    %181 = arith.addf %177, %180 : vector<8x1xf32>
    %182 = math.rsqrt %181 : vector<8x1xf32>
    %183 = vector.broadcast %182 : vector<8x1xf32> to vector<8x32xf32>
    %184 = arith.mulf %179, %183 : vector<8x32xf32>
    %c0_81 = arith.constant 0 : index
    %c0_82 = arith.constant 0 : index
    %185 = vector.load %arg11[%c0_81, %c0_82] : memref<1x32xf32, #tpu.memory_space<vmem>>, vector<1x32xf32>
    %186 = vector.broadcast %185 : vector<1x32xf32> to vector<8x32xf32>
    %187 = arith.mulf %184, %186 : vector<8x32xf32>
    %c0_83 = arith.constant 0 : index
    %c0_84 = arith.constant 0 : index
    %188 = vector.load %arg12[%c0_83, %c0_84] : memref<1x32xf32, #tpu.memory_space<vmem>>, vector<1x32xf32>
    %189 = vector.broadcast %188 : vector<1x32xf32> to vector<8x32xf32>
    %190 = arith.addf %187, %189 : vector<8x32xf32>
    %c0_85 = arith.constant 0 : index
    %c0_86 = arith.constant 0 : index
    %c0_87 = arith.constant 0 : index
    %191 = vector.load %arg13[%c0_85, %c0_86, %c0_87] : memref<1x8x32xf32, #tpu.memory_space<vmem>>, vector<1x8x32xf32>
    %192 = vector.shape_cast %191 : vector<1x8x32xf32> to vector<8x32xf32>
    %193 = vector.shape_cast %190 : vector<8x32xf32> to vector<1x8x32xf32>
    tpu.vector_store %arg13[%c0_85, %c0_86, %c0_87], %193 {strides = array<i32>} : memref<1x8x32xf32, #tpu.memory_space<vmem>>, vector<1x8x32xf32>,
    return
  }
  func.func @transform_0(%arg0: i32) -> (i32, i32, i32) {
    %c0_i32 = arith.constant 0 : i32
    %c0_i32_0 = arith.constant 0 : i32
    %c0_i32_1 = arith.constant 0 : i32
    return %arg0, %c0_i32, %c0_i32_0 : i32, i32, i32
  }
  func.func @transform_1(%arg0: i32) -> (i32, i32, i32) {
    %c0_i32 = arith.constant 0 : i32
    %c0_i32_0 = arith.constant 0 : i32
    %c0_i32_1 = arith.constant 0 : i32
    return %arg0, %c0_i32, %c0_i32_0 : i32, i32, i32
  }
  func.func @transform_2(%arg0: i32) -> (i32, i32) {
    %c0_i32 = arith.constant 0 : i32
    %c0_i32_0 = arith.constant 0 : i32
    %c0_i32_1 = arith.constant 0 : i32
    return %c0_i32, %c0_i32_0 : i32, i32
  }
  func.func @transform_3(%arg0: i32) -> (i32, i32) {
    %c0_i32 = arith.constant 0 : i32
    %c0_i32_0 = arith.constant 0 : i32
    %c0_i32_1 = arith.constant 0 : i32
    return %c0_i32, %c0_i32_0 : i32, i32
  }
  func.func @transform_4(%arg0: i32) -> (i32, i32) {
    %c0_i32 = arith.constant 0 : i32
    %c0_i32_0 = arith.constant 0 : i32
    %c0_i32_1 = arith.constant 0 : i32
    return %c0_i32, %c0_i32_0 : i32, i32
  }
  func.func @transform_5(%arg0: i32) -> (i32, i32) {
    %c0_i32 = arith.constant 0 : i32
    %c0_i32_0 = arith.constant 0 : i32
    %c0_i32_1 = arith.constant 0 : i32
    return %c0_i32, %c0_i32_0 : i32, i32
  }
  func.func @transform_6(%arg0: i32) -> (i32, i32) {
    %c0_i32 = arith.constant 0 : i32
    %c0_i32_0 = arith.constant 0 : i32
    %c0_i32_1 = arith.constant 0 : i32
    return %c0_i32, %c0_i32_0 : i32, i32
  }
  func.func @transform_7(%arg0: i32) -> (i32, i32) {
    %c0_i32 = arith.constant 0 : i32
    %c0_i32_0 = arith.constant 0 : i32
    %c0_i32_1 = arith.constant 0 : i32
    return %c0_i32, %c0_i32_0 : i32, i32
  }
  func.func @transform_8(%arg0: i32) -> (i32, i32) {
    %c0_i32 = arith.constant 0 : i32
    %c0_i32_0 = arith.constant 0 : i32
    %c0_i32_1 = arith.constant 0 : i32
    return %c0_i32, %c0_i32_0 : i32, i32
  }
  func.func @transform_9(%arg0: i32) -> (i32, i32) {
    %c0_i32 = arith.constant 0 : i32
    %c0_i32_0 = arith.constant 0 : i32
    %c0_i32_1 = arith.constant 0 : i32
    return %c0_i32, %c0_i32_0 : i32, i32
  }
  func.func @transform_10(%arg0: i32) -> (i32, i32) {
    %c0_i32 = arith.constant 0 : i32
    %c0_i32_0 = arith.constant 0 : i32
    %c0_i32_1 = arith.constant 0 : i32
    return %c0_i32, %c0_i32_0 : i32, i32
  }
  func.func @transform_11(%arg0: i32) -> (i32, i32) {
    %c0_i32 = arith.constant 0 : i32
    %c0_i32_0 = arith.constant 0 : i32
    %c0_i32_1 = arith.constant 0 : i32
    return %c0_i32, %c0_i32_0 : i32, i32
  }
  func.func @transform_12(%arg0: i32) -> (i32, i32, i32) {
    %c0_i32 = arith.constant 0 : i32
    %c0_i32_0 = arith.constant 0 : i32
    %c0_i32_1 = arith.constant 0 : i32
    return %arg0, %c0_i32, %c0_i32_0 : i32, i32, i32
  }
  func.func @transform_13(%arg0: i32) -> (i32, i32, i32, i32) {
    %c0_i32 = arith.constant 0 : i32
    %c0_i32_0 = arith.constant 0 : i32
    %c0_i32_1 = arith.constant 0 : i32
    %c0_i32_2 = arith.constant 0 : i32
    return %arg0, %c0_i32, %c0_i32_0, %c0_i32_1 : i32, i32, i32, i32
  }
}

</mosaic_0001>

<llo_original>
// kernel: tpu_custom_call.1
$region0: #{tpu_custom_call.1}
  #allocation0 [shape = 'u32[]', space=smem, size = 0x4, offset = 0x4, fixed_abs, tag = 'smem constant byte address 0x4 - core index']
  #allocation1 [shape = 'u32[72,128]{1,0:T(1,128)}', space=vmem, size = 0x9000, scoped, tag = 'internal scratch']
  #allocation2 [shape = 'f32[8,32]{1,0:T(8,128)}', space=vmem, size = 0x1000, scoped, tag = 'scratch operand']
  %s0 = inlined_call_operand.vmem [shape: f32[2,8,32], index: 0, kind: input, shape index: {}]
  %s1 = inlined_call_operand.vmem [shape: f32[2,8,8], index: 1, kind: input, shape index: {}]
  %s2 = inlined_call_operand.vmem [shape: bf16[32,96], index: 2, kind: input, shape index: {}]
  %s3 = inlined_call_operand.hbm [shape: bf16[32,32], index: 3, kind: input, shape index: {}]
  %s4 = inlined_call_operand.hbm [shape: bf16[32,64], index: 4, kind: input, shape index: {}]
  %s5 = inlined_call_operand.vmem [shape: f32[1,64], index: 5, kind: input, shape index: {}]
  %s6 = inlined_call_operand.vmem [shape: bf16[64,32], index: 6, kind: input, shape index: {}]
  %s7 = inlined_call_operand.vmem [shape: f32[1,32], index: 7, kind: input, shape index: {}]
  %s8 = inlined_call_operand.vmem [shape: f32[1,32], index: 8, kind: input, shape index: {}]
  %s9 = inlined_call_operand.vmem [shape: f32[1,32], index: 9, kind: input, shape index: {}]
  %s10 = inlined_call_operand.vmem [shape: f32[1,32], index: 10, kind: input, shape index: {}]
  %s11 = inlined_call_operand.vmem [shape: f32[1,32], index: 11, kind: input, shape index: {}]
  %s12 = inlined_call_operand.hbm [shape: f32[2,8,32], index: 12, kind: output, shape index: {0}]
  %s13 = inlined_call_operand.hbm [shape: f32[2,4,8,8], index: 13, kind: output, shape index: {1}]
  %14 = xla_tuple %s12, %s13
  %s15 = sld [smem:[#allocation0]]
  $region97: #{tpu_custom_call.1} parent=0
    _
  %s17 = ssub.s32 1, %s15
  %s18 = scalar_select 0, %s17, %s15
  $region1: #{tpu_custom_call.1} parent=0
    #allocation3 [shape = 'u8[8192]{0}', space=vmem, size = 0x2000, scoped, tag = 'input window, operand 3, single buffered']
    #allocation4 [shape = 's32[2]{0}', space=sflag, size = 0x8, scoped, tag = 'scoped memory for tpu_custom_call.1']
    #allocation5 [shape = 's32[2]{0}', space=sflag, size = 0x8, scoped, tag = 'scoped memory for tpu_custom_call.1']
    #allocation6 [shape = 'u8[8192]{0}', space=vmem, size = 0x2000, scoped, tag = 'input window, operand 4, single buffered']
    #allocation7 [shape = 's32[1]{0}', space=sflag, size = 0x4, scoped, tag = 'scoped memory for tpu_custom_call.1']
    #allocation8 [shape = 'u8[8192]{0}', space=vmem, size = 0x2000, scoped, tag = 'output window, operand 0']
    #allocation9 [shape = 'u8[32768]{0}', space=vmem, size = 0x8000, scoped, tag = 'output window, operand 1']
    #allocation10 [shape = 's32[2]{0}', space=sflag, size = 0x8, scoped, tag = 'scoped memory for tpu_custom_call.1']
    %19 = vsyncpa [#allocation4], 0
    %20 = vsyncpa [#allocation7], 0
    %21 = vsyncpa [#allocation5], 0
    %s22 = scalar_lea.sflag [#allocation5], 1
    %23 = vsyncpa %s22, 0
    %24 = vsyncpa [#allocation10], 0
    %s25 = scalar_lea.sflag [#allocation10], 1
    %26 = vsyncpa %s25, 0
    loop: start=0, step=1, limit=4
    $region2: #{tpu_custom_call.1} parent=1 // loop_pre_header
      _
    $region3: #{tpu_custom_call.1} parent=1 // loop_header
      %s28 = sphi 0, %s32
      %p29 = scmp.ge.s32.totalorder %s28, 4
      %s38 = sphi 0, %s40
      %s41 = sphi 0, %s38
      %s42 = sphi 0, %s41
      %s58 = sphi 0, %s42
      %s64 = sphi 0, %s66
      %s67 = sphi 0, %s64
      %s68 = sphi 0, %s67
      %s84 = sphi 0, %s68
      %s88 = sphi 0, %s88
      %s90 = sphi 0, %s88
      %s91 = sphi 0, %s90
      %s105 = sphi 0, %s91
      %s109 = sphi 0, %s109
      %s111 = sphi 0, %s109
      %s112 = sphi 0, %s111
      %s126 = sphi 0, %s112
      %s130 = sphi 0, %s130
      %s132 = sphi 0, %s130
      %s133 = sphi 0, %s132
      %s147 = sphi 0, %s133
      %s151 = sphi 0, %s151
      %s153 = sphi 0, %s151
      %s154 = sphi 0, %s153
      %s168 = sphi 0, %s154
      %s172 = sphi 0, %s172
      %s174 = sphi 0, %s172
      %s175 = sphi 0, %s174
      %s189 = sphi 0, %s175
      %s193 = sphi 0, %s193
      %s195 = sphi 0, %s193
      %s196 = sphi 0, %s195
      %s210 = sphi 0, %s196
      %s214 = sphi 0, %s214
      %s216 = sphi 0, %s214
      %s217 = sphi 0, %s216
      %s231 = sphi 0, %s217
      %s235 = sphi 0, %s235
      %s237 = sphi 0, %s235
      %s238 = sphi 0, %s237
      %s252 = sphi 0, %s238
      %s256 = sphi 0, %s256
      %s258 = sphi 0, %s256
      %s259 = sphi 0, %s258
      %s273 = sphi 0, %s259
      %s277 = sphi 0, %s277
      %s279 = sphi 0, %s277
      %s280 = sphi 0, %s279
      %s294 = sphi 0, %s280
      %s300 = sphi 0, %s302
      %s303 = sphi 0, %s300
      %s304 = sphi 0, %s303
      %s320 = sphi 0, %s304
      %s326 = sphi 0, %s328
      %s329 = sphi 0, %s326
      %s330 = sphi 0, %s329
      %s346 = sphi 0, %s330
    $region4: #{tpu_custom_call.1} parent=1 // loop_header_branch
      %31 = sbr.rel (%p29) target = $region8
    $region5: #{tpu_custom_call.1} parent=1 // loop_body
      %s33 = ssub.s32 %s28, 1
      %s34 = ssub.s32 %s28, 2
      %s35 = sadd.s32 %s28, 1
      %s36 = ssub.s32 %s28, %s35
      %p37 = scmp.eq.s32.totalorder %s36, 0
      %s39 = sadd.s32 %s38, 1
      %s40 = scalar_select %p37, %s38, %s39
      %p43 = pneg %p37
      %p44 = scmp.eq.s32.totalorder %s28, 1
      %p45 = por %p43, %p44
      %p46 = scmp.ne.s32.totalorder %s38, %s41
      %p47 = scmp.eq.s32.totalorder %s28, 0
      %p48 = por %p46, %p47
      %p49 = scmp.ne.s32.totalorder %s38, %s41
      %p50 = scmp.eq.s32.totalorder %s33, 1
      %p51 = por %p49, %p50
      %p52 = scmp.ne.s32.totalorder %s41, %s42
      %p53 = scmp.eq.s32.totalorder %s33, 0
      %p54 = por %p52, %p53
      %p55 = scmp.ne.s32.totalorder %s41, %s42
      %p56 = scmp.eq.s32.totalorder %s34, 1
      %p57 = por %p55, %p56
      %p59 = scmp.ne.s32.totalorder %s42, %s58
      %p60 = scmp.eq.s32.totalorder %s34, 0
      %p61 = por %p59, %p60
      %s62 = ssub.s32 %s28, %s35
      %p63 = scmp.eq.s32.totalorder %s62, 0
      %s65 = sadd.s32 %s64, 1
      %s66 = scalar_select %p63, %s64, %s65
      %p69 = pneg %p63
      %p70 = scmp.eq.s32.totalorder %s28, 1
      %p71 = por %p69, %p70
      %p72 = scmp.ne.s32.totalorder %s64, %s67
      %p73 = scmp.eq.s32.totalorder %s28, 0
      %p74 = por %p72, %p73
      %p75 = scmp.ne.s32.totalorder %s64, %s67
      %p76 = scmp.eq.s32.totalorder %s33, 1
      %p77 = por %p75, %p76
      %p78 = scmp.ne.s32.totalorder %s67, %s68
      %p79 = scmp.eq.s32.totalorder %s33, 0
      %p80 = por %p78, %p79
      %p81 = scmp.ne.s32.totalorder %s67, %s68
      %p82 = scmp.eq.s32.totalorder %s34, 1
      %p83 = por %p81, %p82
      %p85 = scmp.ne.s32.totalorder %s68, %s84
      %p86 = scmp.eq.s32.totalorder %s34, 0
      %p87 = por %p85, %p86
      %s89 = sadd.s32 %s88, 1
      %p92 = scmp.eq.s32.totalorder %s28, 1
      %p93 = scmp.ne.s32.totalorder %s88, %s90
      %p94 = scmp.eq.s32.totalorder %s28, 0
      %p95 = por %p93, %p94
      %p96 = scmp.ne.s32.totalorder %s88, %s90
      %p97 = scmp.eq.s32.totalorder %s33, 1
      %p98 = por %p96, %p97
      %p99 = scmp.ne.s32.totalorder %s90, %s91
      %p100 = scmp.eq.s32.totalorder %s33, 0
      %p101 = por %p99, %p100
      %p102 = scmp.ne.s32.totalorder %s90, %s91
      %p103 = scmp.eq.s32.totalorder %s34, 1
      %p104 = por %p102, %p103
      %p106 = scmp.ne.s32.totalorder %s91, %s105
      %p107 = scmp.eq.s32.totalorder %s34, 0
      %p108 = por %p106, %p107
      %s110 = sadd.s32 %s109, 1
      %p113 = scmp.eq.s32.totalorder %s28, 1
      %p114 = scmp.ne.s32.totalorder %s109, %s111
      %p115 = scmp.eq.s32.totalorder %s28, 0
      %p116 = por %p114, %p115
      %p117 = scmp.ne.s32.totalorder %s109, %s111
      %p118 = scmp.eq.s32.totalorder %s33, 1
      %p119 = por %p117, %p118
      %p120 = scmp.ne.s32.totalorder %s111, %s112
      %p121 = scmp.eq.s32.totalorder %s33, 0
      %p122 = por %p120, %p121
      %p123 = scmp.ne.s32.totalorder %s111, %s112
      %p124 = scmp.eq.s32.totalorder %s34, 1
      %p125 = por %p123, %p124
      %p127 = scmp.ne.s32.totalorder %s112, %s126
      %p128 = scmp.eq.s32.totalorder %s34, 0
      %p129 = por %p127, %p128
      %s131 = sadd.s32 %s130, 1
      %p134 = scmp.eq.s32.totalorder %s28, 1
      %p135 = scmp.ne.s32.totalorder %s130, %s132
      %p136 = scmp.eq.s32.totalorder %s28, 0
      %p137 = por %p135, %p136
      %p138 = scmp.ne.s32.totalorder %s130, %s132
      %p139 = scmp.eq.s32.totalorder %s33, 1
      %p140 = por %p138, %p139
      %p141 = scmp.ne.s32.totalorder %s132, %s133
      %p142 = scmp.eq.s32.totalorder %s33, 0
      %p143 = por %p141, %p142
      %p144 = scmp.ne.s32.totalorder %s132, %s133
      %p145 = scmp.eq.s32.totalorder %s34, 1
      %p146 = por %p144, %p145
      %p148 = scmp.ne.s32.totalorder %s133, %s147
      %p149 = scmp.eq.s32.totalorder %s34, 0
      %p150 = por %p148, %p149
      %s152 = sadd.s32 %s151, 1
      %p155 = scmp.eq.s32.totalorder %s28, 1
      %p156 = scmp.ne.s32.totalorder %s151, %s153
      %p157 = scmp.eq.s32.totalorder %s28, 0
      %p158 = por %p156, %p157
      %p159 = scmp.ne.s32.totalorder %s151, %s153
      %p160 = scmp.eq.s32.totalorder %s33, 1
      %p161 = por %p159, %p160
      %p162 = scmp.ne.s32.totalorder %s153, %s154
      %p163 = scmp.eq.s32.totalorder %s33, 0
      %p164 = por %p162, %p163
      %p165 = scmp.ne.s32.totalorder %s153, %s154
      %p166 = scmp.eq.s32.totalorder %s34, 1
      %p167 = por %p165, %p166
      %p169 = scmp.ne.s32.totalorder %s154, %s168
      %p170 = scmp.eq.s32.totalorder %s34, 0
      %p171 = por %p169, %p170
      %s173 = sadd.s32 %s172, 1
      %p176 = scmp.eq.s32.totalorder %s28, 1
      %p177 = scmp.ne.s32.totalorder %s172, %s174
      %p178 = scmp.eq.s32.totalorder %s28, 0
      %p179 = por %p177, %p178
      %p180 = scmp.ne.s32.totalorder %s172, %s174
      %p181 = scmp.eq.s32.totalorder %s33, 1
      %p182 = por %p180, %p181
      %p183 = scmp.ne.s32.totalorder %s174, %s175
      %p184 = scmp.eq.s32.totalorder %s33, 0
      %p185 = por %p183, %p184
      %p186 = scmp.ne.s32.totalorder %s174, %s175
      %p187 = scmp.eq.s32.totalorder %s34, 1
      %p188 = por %p186, %p187
      %p190 = scmp.ne.s32.totalorder %s175, %s189
      %p191 = scmp.eq.s32.totalorder %s34, 0
      %p192 = por %p190, %p191
      %s194 = sadd.s32 %s193, 1
      %p197 = scmp.eq.s32.totalorder %s28, 1
      %p198 = scmp.ne.s32.totalorder %s193, %s195
      %p199 = scmp.eq.s32.totalorder %s28, 0
      %p200 = por %p198, %p199
      %p201 = scmp.ne.s32.totalorder %s193, %s195
      %p202 = scmp.eq.s32.totalorder %s33, 1
      %p203 = por %p201, %p202
      %p204 = scmp.ne.s32.totalorder %s195, %s196
      %p205 = scmp.eq.s32.totalorder %s33, 0
      %p206 = por %p204, %p205
      %p207 = scmp.ne.s32.totalorder %s195, %s196
      %p208 = scmp.eq.s32.totalorder %s34, 1
      %p209 = por %p207, %p208
      %p211 = scmp.ne.s32.totalorder %s196, %s210
      %p212 = scmp.eq.s32.totalorder %s34, 0
      %p213 = por %p211, %p212
      %s215 = sadd.s32 %s214, 1
      %p218 = scmp.eq.s32.totalorder %s28, 1
      %p219 = scmp.ne.s32.totalorder %s214, %s216
      %p220 = scmp.eq.s32.totalorder %s28, 0
      %p221 = por %p219, %p220
      %p222 = scmp.ne.s32.totalorder %s214, %s216
      %p223 = scmp.eq.s32.totalorder %s33, 1
      %p224 = por %p222, %p223
      %p225 = scmp.ne.s32.totalorder %s216, %s217
      %p226 = scmp.eq.s32.totalorder %s33, 0
      %p227 = por %p225, %p226
      %p228 = scmp.ne.s32.totalorder %s216, %s217
      %p229 = scmp.eq.s32.totalorder %s34, 1
      %p230 = por %p228, %p229
      %p232 = scmp.ne.s32.totalorder %s217, %s231
      %p233 = scmp.eq.s32.totalorder %s34, 0
      %p234 = por %p232, %p233
      %s236 = sadd.s32 %s235, 1
      %p239 = scmp.eq.s32.totalorder %s28, 1
      %p240 = scmp.ne.s32.totalorder %s235, %s237
      %p241 = scmp.eq.s32.totalorder %s28, 0
      %p242 = por %p240, %p241
      %p243 = scmp.ne.s32.totalorder %s235, %s237
      %p244 = scmp.eq.s32.totalorder %s33, 1
      %p245 = por %p243, %p244
      %p246 = scmp.ne.s32.totalorder %s237, %s238
      %p247 = scmp.eq.s32.totalorder %s33, 0
      %p248 = por %p246, %p247
      %p249 = scmp.ne.s32.totalorder %s237, %s238
      %p250 = scmp.eq.s32.totalorder %s34, 1
      %p251 = por %p249, %p250
      %p253 = scmp.ne.s32.totalorder %s238, %s252
      %p254 = scmp.eq.s32.totalorder %s34, 0
      %p255 = por %p253, %p254
      %s257 = sadd.s32 %s256, 1
      %p260 = scmp.eq.s32.totalorder %s28, 1
      %p261 = scmp.ne.s32.totalorder %s256, %s258
      %p262 = scmp.eq.s32.totalorder %s28, 0
      %p263 = por %p261, %p262
      %p264 = scmp.ne.s32.totalorder %s256, %s258
      %p265 = scmp.eq.s32.totalorder %s33, 1
      %p266 = por %p264, %p265
      %p267 = scmp.ne.s32.totalorder %s258, %s259
      %p268 = scmp.eq.s32.totalorder %s33, 0
      %p269 = por %p267, %p268
      %p270 = scmp.ne.s32.totalorder %s258, %s259
      %p271 = scmp.eq.s32.totalorder %s34, 1
      %p272 = por %p270, %p271
      %p274 = scmp.ne.s32.totalorder %s259, %s273
      %p275 = scmp.eq.s32.totalorder %s34, 0
      %p276 = por %p274, %p275
      %s278 = sadd.s32 %s277, 1
      %p281 = scmp.eq.s32.totalorder %s28, 1
      %p282 = scmp.ne.s32.totalorder %s277, %s279
      %p283 = scmp.eq.s32.totalorder %s28, 0
      %p284 = por %p282, %p283
      %p285 = scmp.ne.s32.totalorder %s277, %s279
      %p286 = scmp.eq.s32.totalorder %s33, 1
      %p287 = por %p285, %p286
      %p288 = scmp.ne.s32.totalorder %s279, %s280
      %p289 = scmp.eq.s32.totalorder %s33, 0
      %p290 = por %p288, %p289
      %p291 = scmp.ne.s32.totalorder %s279, %s280
      %p292 = scmp.eq.s32.totalorder %s34, 1
      %p293 = por %p291, %p292
      %p295 = scmp.ne.s32.totalorder %s280, %s294
      %p296 = scmp.eq.s32.totalorder %s34, 0
      %p297 = por %p295, %p296
      %s298 = ssub.s32 %s28, %s35
      %p299 = scmp.eq.s32.totalorder %s298, 0
      %s301 = sadd.s32 %s300, 1
      %s302 = scalar_select %p299, %s300, %s301
      %p305 = pneg %p299
      %p306 = scmp.eq.s32.totalorder %s28, 1
      %p307 = por %p305, %p306
      %p308 = scmp.ne.s32.totalorder %s300, %s303
      %p309 = scmp.eq.s32.totalorder %s28, 0
      %p310 = por %p308, %p309
      %p311 = scmp.ne.s32.totalorder %s300, %s303
      %p312 = scmp.eq.s32.totalorder %s33, 1
      %p313 = por %p311, %p312
      %p314 = scmp.ne.s32.totalorder %s303, %s304
      %p315 = scmp.eq.s32.totalorder %s33, 0
      %p316 = por %p314, %p315
      %p317 = scmp.ne.s32.totalorder %s303, %s304
      %p318 = scmp.eq.s32.totalorder %s34, 1
      %p319 = por %p317, %p318
      %p321 = scmp.ne.s32.totalorder %s304, %s320
      %p322 = scmp.eq.s32.totalorder %s34, 0
      %p323 = por %p321, %p322
      %s324 = ssub.s32 %s28, %s35
      %p325 = scmp.eq.s32.totalorder %s324, 0
      %s327 = sadd.s32 %s326, 1
      %s328 = scalar_select %p325, %s326, %s327
      %p331 = pneg %p325
      %p332 = scmp.eq.s32.totalorder %s28, 1
      %p333 = por %p331, %p332
      %p334 = scmp.ne.s32.totalorder %s326, %s329
      %p335 = scmp.eq.s32.totalorder %s28, 0
      %p336 = por %p334, %p335
      %p337 = scmp.ne.s32.totalorder %s326, %s329
      %p338 = scmp.eq.s32.totalorder %s33, 1
      %p339 = por %p337, %p338
      %p340 = scmp.ne.s32.totalorder %s329, %s330
      %p341 = scmp.eq.s32.totalorder %s33, 0
      %p342 = por %p340, %p341
      %p343 = scmp.ne.s32.totalorder %s329, %s330
      %p344 = scmp.eq.s32.totalorder %s34, 1
      %p345 = por %p343, %p344
      %p347 = scmp.ne.s32.totalorder %s330, %s346
      %p348 = scmp.eq.s32.totalorder %s34, 0
      %p349 = por %p347, %p348
      %p350 = scmp.le.s32.totalorder 1, %s28
      %p351 = scmp.lt.s32.totalorder %s28, 3
      %p352 = pnand %p350, %p351
      %p353 = pneg %p352
      // Predicated region
      $region9: #{tpu_custom_call.1} parent=5 // pred_check
        _
      $region10: #{tpu_custom_call.1} parent=5 // pred_check_branch
        %355 = sbr.rel (%p352) target = $region12
      $region11: #{tpu_custom_call.1} parent=5 // pred_region
        %s356 = ssub.s32 %s28, 1
        // Predicated region
        $region13: #{tpu_custom_call.1} parent=11 // pred_check
          %p357 = pneg %p101
        $region14: #{tpu_custom_call.1} parent=11 // pred_check_branch
          %359 = sbr.rel (%p357) target = $region16
        $region15: #{tpu_custom_call.1} parent=11 // pred_region
          _
        $region16: #{tpu_custom_call.1} parent=11 // pred_fallthru
          _
        // Predicated region
        $region17: #{tpu_custom_call.1} parent=11 // pred_check
          %p360 = pneg %p122
        $region18: #{tpu_custom_call.1} parent=11 // pred_check_branch
          %362 = sbr.rel (%p360) target = $region20
        $region19: #{tpu_custom_call.1} parent=11 // pred_region
          %364 = vsyncadd [#allocation4], 0
          %s365 = sshll.u32 %s3, 4
          %s366 = int_to_ptr.hbm [resolvable:$true] %s365
          %s367 = sshll.u32 [#allocation3], 4
          %s368 = int_to_ptr.vmem [resolvable:$true] %s367
          %373 = dma.hbm_to_vmem [thread:$0]  %s366, 256, %s368, [#allocation4], 64, 64, 4
        $region20: #{tpu_custom_call.1} parent=11 // pred_fallthru
          _
        // Predicated region
        $region21: #{tpu_custom_call.1} parent=11 // pred_check
          %p374 = pneg %p143
        $region22: #{tpu_custom_call.1} parent=11 // pred_check_branch
          %376 = sbr.rel (%p374) target = $region24
        $region23: #{tpu_custom_call.1} parent=11 // pred_region
          %378 = vsyncadd [#allocation7], 0
          %s379 = sshll.u32 %s4, 4
          %s380 = int_to_ptr.hbm [resolvable:$true] %s379
          %s381 = sshll.u32 [#allocation6], 4
          %s382 = int_to_ptr.vmem [resolvable:$true] %s381
          %387 = dma.hbm_to_vmem [thread:$0]  %s380, 256, %s382, [#allocation7], 64, 64, 4
        $region24: #{tpu_custom_call.1} parent=11 // pred_fallthru
          _
        // Predicated region
        $region25: #{tpu_custom_call.1} parent=11 // pred_check
          %p388 = pneg %p164
        $region26: #{tpu_custom_call.1} parent=11 // pred_check_branch
          %390 = sbr.rel (%p388) target = $region28
        $region27: #{tpu_custom_call.1} parent=11 // pred_region
          _
        $region28: #{tpu_custom_call.1} parent=11 // pred_fallthru
          _
        // Predicated region
        $region29: #{tpu_custom_call.1} parent=11 // pred_check
          %p391 = pneg %p185
        $region30: #{tpu_custom_call.1} parent=11 // pred_check_branch
          %393 = sbr.rel (%p391) target = $region32
        $region31: #{tpu_custom_call.1} parent=11 // pred_region
          _
        $region32: #{tpu_custom_call.1} parent=11 // pred_fallthru
          _
        // Predicated region
        $region33: #{tpu_custom_call.1} parent=11 // pred_check
          %p394 = pneg %p206
        $region34: #{tpu_custom_call.1} parent=11 // pred_check_branch
          %396 = sbr.rel (%p394) target = $region36
        $region35: #{tpu_custom_call.1} parent=11 // pred_region
          _
        $region36: #{tpu_custom_call.1} parent=11 // pred_fallthru
          _
        // Predicated region
        $region37: #{tpu_custom_call.1} parent=11 // pred_check
          %p397 = pneg %p227
        $region38: #{tpu_custom_call.1} parent=11 // pred_check_branch
          %399 = sbr.rel (%p397) target = $region40
        $region39: #{tpu_custom_call.1} parent=11 // pred_region
          _
        $region40: #{tpu_custom_call.1} parent=11 // pred_fallthru
          _
        // Predicated region
        $region41: #{tpu_custom_call.1} parent=11 // pred_check
          %p400 = pneg %p248
        $region42: #{tpu_custom_call.1} parent=11 // pred_check_branch
          %402 = sbr.rel (%p400) target = $region44
        $region43: #{tpu_custom_call.1} parent=11 // pred_region
          _
        $region44: #{tpu_custom_call.1} parent=11 // pred_fallthru
          _
        // Predicated region
        $region45: #{tpu_custom_call.1} parent=11 // pred_check
          %p403 = pneg %p269
        $region46: #{tpu_custom_call.1} parent=11 // pred_check_branch
          %405 = sbr.rel (%p403) target = $region48
        $region47: #{tpu_custom_call.1} parent=11 // pred_region
          _
        $region48: #{tpu_custom_call.1} parent=11 // pred_fallthru
          _
        // Predicated region
        $region49: #{tpu_custom_call.1} parent=11 // pred_check
          %p406 = pneg %p290
        $region50: #{tpu_custom_call.1} parent=11 // pred_check_branch
          %408 = sbr.rel (%p406) target = $region52
        $region51: #{tpu_custom_call.1} parent=11 // pred_region
          _
        $region52: #{tpu_custom_call.1} parent=11 // pred_fallthru
          _
      $region12: #{tpu_custom_call.1} parent=5 // pred_fallthru
        _
      %p409 = scmp.lt.s32.totalorder %s28, 2
      // Predicated region
      $region53: #{tpu_custom_call.1} parent=5 // pred_check
        %p410 = pneg %p409
      $region54: #{tpu_custom_call.1} parent=5 // pred_check_branch
        %412 = sbr.rel (%p410) target = $region56
      $region55: #{tpu_custom_call.1} parent=5 // pred_region
        // Predicated region
        $region57: #{tpu_custom_call.1} parent=55 // pred_check
          %p413 = pneg %p48
        $region58: #{tpu_custom_call.1} parent=55 // pred_check_branch
          %415 = sbr.rel (%p413) target = $region60
        $region59: #{tpu_custom_call.1} parent=55 // pred_region
          %p416 = scmp.lt.s32.totalorder %s28, 1
          %s417 = scalar_select %p416, %s28, 1
          %s418 = smul.addr %s417, 8
          %s419 = scalar_lea.vmem %s0, %s418
        $region60: #{tpu_custom_call.1} parent=55 // pred_fallthru
          _
        // Predicated region
        $region61: #{tpu_custom_call.1} parent=55 // pred_check
          %p420 = pneg %p74
        $region62: #{tpu_custom_call.1} parent=55 // pred_check_branch
          %422 = sbr.rel (%p420) target = $region64
        $region63: #{tpu_custom_call.1} parent=55 // pred_region
          %p423 = scmp.lt.s32.totalorder %s28, 1
          %s424 = scalar_select %p423, %s28, 1
          %s425 = smul.addr %s424, 8
          %s426 = scalar_lea.vmem %s1, %s425
        $region64: #{tpu_custom_call.1} parent=55 // pred_fallthru
          _
      $region56: #{tpu_custom_call.1} parent=5 // pred_fallthru
        _
      %p427 = scmp.le.s32.totalorder 1, %s28
      %p428 = scmp.lt.s32.totalorder %s28, 3
      %p429 = pnand %p427, %p428
      %p430 = pneg %p429
      // Predicated region
      $region65: #{tpu_custom_call.1} parent=5 // pred_check
        _
      $region66: #{tpu_custom_call.1} parent=5 // pred_check_branch
        %432 = sbr.rel (%p429) target = $region68
      $region67: #{tpu_custom_call.1} parent=5 // pred_region
        %s433 = ssub.s32 %s28, 1
        // Predicated region
        $region69: #{tpu_custom_call.1} parent=67 // pred_check
          %p434 = pneg %p122
        $region70: #{tpu_custom_call.1} parent=67 // pred_check_branch
          %436 = sbr.rel (%p434) target = $region72
        $region71: #{tpu_custom_call.1} parent=67 // pred_region
          %438 = dma.done [#allocation4], 256
        $region72: #{tpu_custom_call.1} parent=67 // pred_fallthru
          _
        // Predicated region
        $region73: #{tpu_custom_call.1} parent=67 // pred_check
          %p439 = pneg %p143
        $region74: #{tpu_custom_call.1} parent=67 // pred_check_branch
          %441 = sbr.rel (%p439) target = $region76
        $region75: #{tpu_custom_call.1} parent=67 // pred_region
          %443 = dma.done [#allocation7], 256
        $region76: #{tpu_custom_call.1} parent=67 // pred_fallthru
          _
        %p444 = scmp.lt.s32.totalorder %s33, 1
        %s445 = scalar_select %p444, %s33, 1
        %s446 = smul.addr %s445, 8
        %s447 = scalar_lea.vmem %s0, %s446
        %p448 = pneg %p54
        %p449 = pneg %p51
        %p450 = scmp.lt.s32.totalorder %s33, 1
        %s451 = scalar_select %p450, %s33, 1
        %s452 = smul.addr %s451, 8
        %s453 = scalar_lea.vmem %s1, %s452
        %p454 = pneg %p80
        %p455 = pneg %p77
        %p456 = pneg %p101
        %p457 = pneg %p98
        %p458 = pneg %p122
        %p459 = pneg %p119
        %p460 = pneg %p143
        %p461 = pneg %p140
        %p462 = pneg %p164
        %p463 = pneg %p161
        %p464 = pneg %p185
        %p465 = pneg %p182
        %p466 = pneg %p206
        %p467 = pneg %p203
        %p468 = pneg %p227
        %p469 = pneg %p224
        %p470 = pneg %p248
        %p471 = pneg %p245
        %p472 = pneg %p269
        %p473 = pneg %p266
        %p474 = pneg %p290
        %p475 = pneg %p287
        %p476 = pneg %p316
        %p477 = pneg %p313
        %s478 = sand.u32 %s303, 1
        %s479 = scalar_lea.sflag [#allocation5], %s478
        %s480 = sand.u32 %s303, 1
        %s481 = smul.addr %s480, 8
        %s482 = scalar_lea.vmem [#allocation8], %s481
        %p483 = pneg %p342
        %p484 = pneg %p339
        %s485 = sand.u32 %s329, 1
        %s486 = scalar_lea.sflag [#allocation10], %s485
        %s487 = sand.u32 %s329, 1
        %s488 = smul.addr %s487, 32
        %s489 = scalar_lea.vmem [#allocation9], %s488
        %p490 = scmp.lt.s32.totalorder %s33, 1
        %s491 = scalar_select %p490, %s33, 1
        %s492 = smul.addr %s491, 8
        %s493 = scalar_lea.vmem %s0, %s492
        %p494 = scmp.lt.s32.totalorder %s33, 1
        %s495 = scalar_select %p494, %s33, 1
        %s496 = smul.addr %s495, 8
        %s497 = scalar_lea.vmem %s1, %s496
        %v499 = vld [vmem:[%s493] sm:$0xff]
        %v500 = vld [vmem:[%s497] sm:$0xff]
        %v501 = vpack.c.bf16 %v499, %v499
        %v502 = vld [vmem:[%s2] sm:$0xf]
        %v503 = vld [vmem:[%s2 + $0x4] sm:$0xf]
        %v504 = vld [vmem:[%s2 + $0x8] sm:$0xf]
        %v505 = vld [vmem:[%s2 + $0xc] sm:$0xf]
        %v510 = vunpack.c.l.b16 %v502
        %v511 = vunpack.c.l.b16 %v503
        %v512 = vunpack.c.l.b16 %v504
        %v513 = vunpack.c.l.b16 %v505
        %v514 = vpack.c.b16 %v511, %v510
        %v515 = vpack.c.b16 %v513, %v512
        %vm518 = vcmask 261120
        %v520 = vsel %vm518, %v501, 0
        %522 = vmatpush.bf16.msra.mxu0 0
        %523 = vmatpush.bf16.msra.mxu0 0
        %524 = vmatpush.bf16.msra.mxu0 0
        %525 = vmatpush.bf16.msra.mxu0 0
        %526 = vmatpush.bf16.msra.mxu0 0
        %527 = vmatpush.bf16.msra.mxu0 0
        %528 = vmatpush.bf16.msra.mxu0 %v515
        %529 = vmatpush.bf16.msra.mxu0 %v514
        %530 = vmatmul.bf16.gmra.mxu0 %v520
        %v531 = vpop.f32.mrf.mxu0
        %v532 = vadd.f32 0.0, %v531
        %v533 = vpop.f32.mrf.mxu0
        %534 = vdwg.mxu0
        %536 = vrot.lane.b32.xlu0 %v532, 96
        %v537 = vpop.permute.xlu0 %536
        %vm538 = vcmask 64512
        %v539 = vsel %vm538, %v532, 0
        %v541 = vsel %vm538, %v537, 0
        %543 = vmatpush.xpose.msra.mxu0 0.0
        %544 = vmatpush.xpose.msra.mxu0 0.0
        %545 = vmatpush.xpose.msra.mxu0 0.0
        %546 = vmatpush.xpose.msra.mxu0 0.0
        %547 = vmatpush.xpose.msra.mxu0 0.0
        %548 = vmatpush.xpose.msra.mxu0 0.0
        %549 = vmatpush.xpose.msra.mxu0 0.0
        %550 = vmatpush.xpose.msra.mxu0 0.0
        %551 = vmatpush.xpose.msra.mxu0 0.0
        %552 = vmatpush.xpose.msra.mxu0 0.0
        %553 = vmatpush.xpose.msra.mxu0 0.0
        %554 = vmatpush.xpose.msra.mxu0 0.0
        %555 = vmatpush.xpose.msra.mxu0 0.0
        %556 = vmatpush.xpose.msra.mxu0 0.0
        %557 = vmatpush.xpose.msra.mxu0 0.0
        %558 = vmatpush.xpose.msra.mxu0 %v541
        %559 = vmatmul.f32.gmra.mxu0 %v539
        %v560 = vpop.f32.mrf.mxu0
        %v561 = vadd.f32 0.0, %v560
        %562 = vdwg.mxu0
        %v563 = vmul.f32 %v561, 0.35355338
        %v564 = vadd.f32 %v563, %v500
        %v565 = vsel %vm538, %v564, -inf
        %566 = vmax.xlane.f32.xlu0 %v565
        %v567 = vpop.xlane.xlu0 %566
        %v568 = vsub.f32 %v564, %v567
        %v569 = vmul.f32 %v568, 1.442695
        %v570 = vpow.pop %v569
        %v571 = vsel %vm538, %v570, 0.0
        %572 = vadd.xlane.f32.xlu0 %v571
        %v573 = vpop.xlane.xlu0 %572
        %v574 = vrcp.pop %v573
        %v575 = vmul.f32 %v573, %v574
        %v576 = vsub.f32 1.0, %v575
        %v577 = vmul.f32 %v574, %v576
        %v578 = vadd.f32 %v574, %v577
        %vm579 = vweird.f32 %v573
        %vm580 = vweird.f32 %v574
        %vm581 = vmor %vm579, %vm580
        %v582 = vsel %vm581, %v574, %v578
        %v583 = vand.u32 2147483647, %v573
        %vm584 = vcmp.eq.f32.partialorder %v583, 8.507059e+37
        %v585 = vand.u32 %v573, 2147483648
        %v586 = vor.u32 1.1754944e-38, %v585
        %v587 = vsel %vm584, %v586, %v582
        %v588 = vmul.f32 %v570, %v587
        %589 = vst.msk [vmem:[%s489] sm:$0xff] %vm538, %v588
        %vm590 = vcmp.ne.f32.partialorder %v588, %v588
        %v591 = vsel %vm590, 0.0, %v588
        %v592 = vpack.c.bf16 %v591, %v591
        %v593 = vpack.c.bf16 %v532, %v532
        %595 = vrot.lane.b32.xlu0 %v593, 64
        %v596 = vpop.permute.xlu0 %595
        %v598 = vsel %vm538, %v592, 0
        %vm600 = vcmask 1043456
        %v602 = vsel %vm600, %v596, 0
        %604 = vmatpush.bf16.msra.mxu0 0
        %605 = vmatpush.bf16.msra.mxu0 0
        %606 = vmatpush.bf16.msra.mxu0 0
        %607 = vmatpush.bf16.msra.mxu0 0
        %608 = vmatpush.bf16.msra.mxu0 0
        %609 = vmatpush.bf16.msra.mxu0 0
        %610 = vmatpush.bf16.msra.mxu0 0
        %611 = vmatpush.bf16.msra.mxu0 %v602
        %612 = vmatmul.bf16.gmra.mxu0 %v598
        %v613 = vpop.f32.mrf.mxu0
        %v614 = vadd.f32 0.0, %v613
        %v615 = vpop.f32.mrf.mxu0
        %616 = vdwg.mxu0
        %617 = vst.msk [vmem:[#allocation2] sm:$0xff] %vm538, %v614
        %618 = vrot.lane.b32.xlu0 %v532, 120
        %v619 = vpop.permute.xlu0 %618
        %620 = vrot.lane.b32.xlu0 %v532, 88
        %v621 = vpop.permute.xlu0 %620
        %v622 = vsel %vm538, %v619, 0
        %v624 = vsel %vm538, %v621, 0
        %626 = vmatpush.xpose.msra.mxu0 0.0
        %627 = vmatpush.xpose.msra.mxu0 0.0
        %628 = vmatpush.xpose.msra.mxu0 0.0
        %629 = vmatpush.xpose.msra.mxu0 0.0
        %630 = vmatpush.xpose.msra.mxu0 0.0
        %631 = vmatpush.xpose.msra.mxu0 0.0
        %632 = vmatpush.xpose.msra.mxu0 0.0
        %633 = vmatpush.xpose.msra.mxu0 0.0
        %634 = vmatpush.xpose.msra.mxu0 0.0
        %635 = vmatpush.xpose.msra.mxu0 0.0
        %636 = vmatpush.xpose.msra.mxu0 0.0
        %637 = vmatpush.xpose.msra.mxu0 0.0
        %638 = vmatpush.xpose.msra.mxu0 0.0
        %639 = vmatpush.xpose.msra.mxu0 0.0
        %640 = vmatpush.xpose.msra.mxu0 0.0
        %641 = vmatpush.xpose.msra.mxu0 %v624
        %642 = vmatmul.f32.gmra.mxu0 %v622
        %v643 = vpop.f32.mrf.mxu0
        %v644 = vadd.f32 0.0, %v643
        %645 = vdwg.mxu0
        %v646 = vmul.f32 %v644, 0.35355338
        %v647 = vadd.f32 %v646, %v500
        %v648 = vsel %vm538, %v647, -inf
        %649 = vmax.xlane.f32.xlu0 %v648
        %v650 = vpop.xlane.xlu0 %649
        %v651 = vsub.f32 %v647, %v650
        %v652 = vmul.f32 %v651, 1.442695
        %v653 = vpow.pop %v652
        %v654 = vsel %vm538, %v653, 0.0
        %655 = vadd.xlane.f32.xlu0 %v654
        %v656 = vpop.xlane.xlu0 %655
        %v657 = vrcp.pop %v656
        %v658 = vmul.f32 %v656, %v657
        %v659 = vsub.f32 1.0, %v658
        %v660 = vmul.f32 %v657, %v659
        %v661 = vadd.f32 %v657, %v660
        %vm662 = vweird.f32 %v656
        %vm663 = vweird.f32 %v657
        %vm664 = vmor %vm662, %vm663
        %v665 = vsel %vm664, %v657, %v661
        %v666 = vand.u32 2147483647, %v656
        %vm667 = vcmp.eq.f32.partialorder %v666, 8.507059e+37
        %v668 = vand.u32 %v656, 2147483648
        %v669 = vor.u32 1.1754944e-38, %v668
        %v670 = vsel %vm667, %v669, %v665
        %v671 = vmul.f32 %v653, %v670
        %s672 = scalar_lea.vmem %s489, 8 [#allocation9]
        %673 = vst.msk [vmem:[%s672] sm:$0xff] %vm538, %v671
        %vm674 = vcmp.ne.f32.partialorder %v671, %v671
        %v675 = vsel %vm674, 0.0, %v671
        %v676 = vpack.c.bf16 %v675, %v675
        %677 = vrot.lane.b32.xlu0 %v593, 56
        %v678 = vpop.permute.xlu0 %677
        %v680 = vsel %vm538, %v676, 0
        %v683 = vsel %vm600, %v678, 0
        %685 = vmatpush.bf16.msra.mxu0 0
        %686 = vmatpush.bf16.msra.mxu0 0
        %687 = vmatpush.bf16.msra.mxu0 0
        %688 = vmatpush.bf16.msra.mxu0 0
        %689 = vmatpush.bf16.msra.mxu0 0
        %690 = vmatpush.bf16.msra.mxu0 0
        %691 = vmatpush.bf16.msra.mxu0 0
        %692 = vmatpush.bf16.msra.mxu0 %v683
        %693 = vmatmul.bf16.gmra.mxu0 %v680
        %v694 = vpop.f32.mrf.mxu0
        %v695 = vadd.f32 0.0, %v694
        %v696 = vpop.f32.mrf.mxu0
        %697 = vdwg.mxu0
        %699 = vrot.lane.b32.xlu0 %v695, 8
        %v700 = vpop.permute.xlu0 %699
        %vm702 = vcmask 130112
        %703 = vst.msk [vmem:[#allocation2] sm:$0xff] %vm702, %v700
        %704 = vrot.lane.b32.xlu0 %v532, 112
        %v705 = vpop.permute.xlu0 %704
        %706 = vrot.lane.b32.xlu0 %v532, 80
        %v707 = vpop.permute.xlu0 %706
        %v708 = vsel %vm538, %v705, 0
        %v710 = vsel %vm538, %v707, 0
        %712 = vmatpush.xpose.msra.mxu0 0.0
        %713 = vmatpush.xpose.msra.mxu0 0.0
        %714 = vmatpush.xpose.msra.mxu0 0.0
        %715 = vmatpush.xpose.msra.mxu0 0.0
        %716 = vmatpush.xpose.msra.mxu0 0.0
        %717 = vmatpush.xpose.msra.mxu0 0.0
        %718 = vmatpush.xpose.msra.mxu0 0.0
        %719 = vmatpush.xpose.msra.mxu0 0.0
        %720 = vmatpush.xpose.msra.mxu0 0.0
        %721 = vmatpush.xpose.msra.mxu0 0.0
        %722 = vmatpush.xpose.msra.mxu0 0.0
        %723 = vmatpush.xpose.msra.mxu0 0.0
        %724 = vmatpush.xpose.msra.mxu0 0.0
        %725 = vmatpush.xpose.msra.mxu0 0.0
        %726 = vmatpush.xpose.msra.mxu0 0.0
        %727 = vmatpush.xpose.msra.mxu0 %v710
        %728 = vmatmul.f32.gmra.mxu0 %v708
        %v729 = vpop.f32.mrf.mxu0
        %v730 = vadd.f32 0.0, %v729
        %731 = vdwg.mxu0
        %v732 = vmul.f32 %v730, 0.35355338
        %v733 = vadd.f32 %v732, %v500
        %v734 = vsel %vm538, %v733, -inf
        %735 = vmax.xlane.f32.xlu0 %v734
        %v736 = vpop.xlane.xlu0 %735
        %v737 = vsub.f32 %v733, %v736
        %v738 = vmul.f32 %v737, 1.442695
        %v739 = vpow.pop %v738
        %v740 = vsel %vm538, %v739, 0.0
        %741 = vadd.xlane.f32.xlu0 %v740
        %v742 = vpop.xlane.xlu0 %741
        %v743 = vrcp.pop %v742
        %v744 = vmul.f32 %v742, %v743
        %v745 = vsub.f32 1.0, %v744
        %v746 = vmul.f32 %v743, %v745
        %v747 = vadd.f32 %v743, %v746
        %vm748 = vweird.f32 %v742
        %vm749 = vweird.f32 %v743
        %vm750 = vmor %vm748, %vm749
        %v751 = vsel %vm750, %v743, %v747
        %v752 = vand.u32 2147483647, %v742
        %vm753 = vcmp.eq.f32.partialorder %v752, 8.507059e+37
        %v754 = vand.u32 %v742, 2147483648
        %v755 = vor.u32 1.1754944e-38, %v754
        %v756 = vsel %vm753, %v755, %v751
        %v757 = vmul.f32 %v739, %v756
        %s758 = scalar_lea.vmem %s489, 16 [#allocation9]
        %759 = vst.msk [vmem:[%s758] sm:$0xff] %vm538, %v757
        %vm760 = vcmp.ne.f32.partialorder %v757, %v757
        %v761 = vsel %vm760, 0.0, %v757
        %v762 = vpack.c.bf16 %v761, %v761
        %763 = vrot.lane.b32.xlu0 %v593, 48
        %v764 = vpop.permute.xlu0 %763
        %v766 = vsel %vm538, %v762, 0
        %v769 = vsel %vm600, %v764, 0
        %771 = vmatpush.bf16.msra.mxu0 0
        %772 = vmatpush.bf16.msra.mxu0 0
        %773 = vmatpush.bf16.msra.mxu0 0
        %774 = vmatpush.bf16.msra.mxu0 0
        %775 = vmatpush.bf16.msra.mxu0 0
        %776 = vmatpush.bf16.msra.mxu0 0
        %777 = vmatpush.bf16.msra.mxu0 0
        %778 = vmatpush.bf16.msra.mxu0 %v769
        %779 = vmatmul.bf16.gmra.mxu0 %v766
        %v780 = vpop.f32.mrf.mxu0
        %v781 = vadd.f32 0.0, %v780
        %v782 = vpop.f32.mrf.mxu0
        %783 = vdwg.mxu0
        %785 = vrot.lane.b32.xlu0 %v781, 16
        %v786 = vpop.permute.xlu0 %785
        %vm788 = vcmask 195712
        %789 = vst.msk [vmem:[#allocation2] sm:$0xff] %vm788, %v786
        %790 = vrot.lane.b32.xlu0 %v532, 104
        %v791 = vpop.permute.xlu0 %790
        %792 = vrot.lane.b32.xlu0 %v532, 72
        %v793 = vpop.permute.xlu0 %792
        %v794 = vsel %vm538, %v791, 0
        %v796 = vsel %vm538, %v793, 0
        %798 = vmatpush.xpose.msra.mxu0 0.0
        %799 = vmatpush.xpose.msra.mxu0 0.0
        %800 = vmatpush.xpose.msra.mxu0 0.0
        %801 = vmatpush.xpose.msra.mxu0 0.0
        %802 = vmatpush.xpose.msra.mxu0 0.0
        %803 = vmatpush.xpose.msra.mxu0 0.0
        %804 = vmatpush.xpose.msra.mxu0 0.0
        %805 = vmatpush.xpose.msra.mxu0 0.0
        %806 = vmatpush.xpose.msra.mxu0 0.0
        %807 = vmatpush.xpose.msra.mxu0 0.0
        %808 = vmatpush.xpose.msra.mxu0 0.0
        %809 = vmatpush.xpose.msra.mxu0 0.0
        %810 = vmatpush.xpose.msra.mxu0 0.0
        %811 = vmatpush.xpose.msra.mxu0 0.0
        %812 = vmatpush.xpose.msra.mxu0 0.0
        %813 = vmatpush.xpose.msra.mxu0 %v796
        %814 = vmatmul.f32.gmra.mxu0 %v794
        %v815 = vpop.f32.mrf.mxu0
        %v816 = vadd.f32 0.0, %v815
        %817 = vdwg.mxu0
        %v818 = vmul.f32 %v816, 0.35355338
        %v819 = vadd.f32 %v818, %v500
        %v820 = vsel %vm538, %v819, -inf
        %821 = vmax.xlane.f32.xlu0 %v820
        %v822 = vpop.xlane.xlu0 %821
        %v823 = vsub.f32 %v819, %v822
        %v824 = vmul.f32 %v823, 1.442695
        %v825 = vpow.pop %v824
        %v826 = vsel %vm538, %v825, 0.0
        %827 = vadd.xlane.f32.xlu0 %v826
        %v828 = vpop.xlane.xlu0 %827
        %v829 = vrcp.pop %v828
        %v830 = vmul.f32 %v828, %v829
        %v831 = vsub.f32 1.0, %v830
        %v832 = vmul.f32 %v829, %v831
        %v833 = vadd.f32 %v829, %v832
        %vm834 = vweird.f32 %v828
        %vm835 = vweird.f32 %v829
        %vm836 = vmor %vm834, %vm835
        %v837 = vsel %vm836, %v829, %v833
        %v838 = vand.u32 2147483647, %v828
        %vm839 = vcmp.eq.f32.partialorder %v838, 8.507059e+37
        %v840 = vand.u32 %v828, 2147483648
        %v841 = vor.u32 1.1754944e-38, %v840
        %v842 = vsel %vm839, %v841, %v837
        %v843 = vmul.f32 %v825, %v842
        %s844 = scalar_lea.vmem %s489, 24 [#allocation9]
        %845 = vst.msk [vmem:[%s844] sm:$0xff] %vm538, %v843
        %vm846 = vcmp.ne.f32.partialorder %v843, %v843
        %v847 = vsel %vm846, 0.0, %v843
        %v848 = vpack.c.bf16 %v847, %v847
        %849 = vrot.lane.b32.xlu0 %v593, 40
        %v850 = vpop.permute.xlu0 %849
        %v852 = vsel %vm538, %v848, 0
        %v855 = vsel %vm600, %v850, 0
        %857 = vmatpush.bf16.msra.mxu0 0
        %858 = vmatpush.bf16.msra.mxu0 0
        %859 = vmatpush.bf16.msra.mxu0 0
        %860 = vmatpush.bf16.msra.mxu0 0
        %861 = vmatpush.bf16.msra.mxu0 0
        %862 = vmatpush.bf16.msra.mxu0 0
        %863 = vmatpush.bf16.msra.mxu0 0
        %864 = vmatpush.bf16.msra.mxu0 %v855
        %865 = vmatmul.bf16.gmra.mxu0 %v852
        %v866 = vpop.f32.mrf.mxu0
        %v867 = vadd.f32 0.0, %v866
        %v868 = vpop.f32.mrf.mxu0
        %869 = vdwg.mxu0
        %871 = vrot.lane.b32.xlu0 %v867, 24
        %v872 = vpop.permute.xlu0 %871
        %vm874 = vcmask 261312
        %875 = vst.msk [vmem:[#allocation2] sm:$0xff] %vm874, %v872
        %v876 = vld [vmem:[#allocation2] sm:$0xff]
        %v877 = vpack.c.bf16 %v876, %v876
        %v878 = vld [vmem:[#allocation3] sm:$0xf]
        %v879 = vld [vmem:[#allocation3 + $0x4] sm:$0xf]
        %v880 = vld [vmem:[#allocation3 + $0x8] sm:$0xf]
        %v881 = vld [vmem:[#allocation3 + $0xc] sm:$0xf]
        %v886 = vunpack.c.l.b16 %v878
        %v887 = vunpack.c.l.b16 %v879
        %v888 = vunpack.c.l.b16 %v880
        %v889 = vunpack.c.l.b16 %v881
        %v890 = vpack.c.b16 %v887, %v886
        %v891 = vpack.c.b16 %v889, %v888
        %v895 = vsel %vm518, %v877, 0
        %897 = vmatpush.bf16.msra.mxu0 0
        %898 = vmatpush.bf16.msra.mxu0 0
        %899 = vmatpush.bf16.msra.mxu0 0
        %900 = vmatpush.bf16.msra.mxu0 0
        %901 = vmatpush.bf16.msra.mxu0 0
        %902 = vmatpush.bf16.msra.mxu0 0
        %903 = vmatpush.bf16.msra.mxu0 %v891
        %904 = vmatpush.bf16.msra.mxu0 %v890
        %905 = vmatmul.bf16.gmra.mxu0 %v895
        %v906 = vpop.f32.mrf.mxu0
        %v907 = vadd.f32 0.0, %v906
        %v908 = vpop.f32.mrf.mxu0
        %909 = vdwg.mxu0
        %v910 = vmul.f32 %v907, 2.0
        %v911 = vadd.f32 %v910, %v499
        %v912 = vsel %vm518, %v911, 0.0
        %913 = vadd.xlane.f32.xlu0 %v912
        %v914 = vpop.xlane.xlu0 %913
        %v915 = vrcp.pop 32.0
        %v916 = vmul.f32 32.0, %v915
        %v917 = vsub.f32 1.0, %v916
        %v918 = vmul.f32 %v915, %v917
        %v919 = vadd.f32 %v915, %v918
        %vm920 = vweird.f32 %v915
        %v921 = vsel %vm920, %v915, %v919
        %v922 = vmul.f32 %v914, %v921
        %v923 = vsub.f32 %v911, %v922
        %v924 = vmul.f32 %v923, %v923
        %v925 = vsel %vm518, %v924, 0.0
        %926 = vadd.xlane.f32.xlu0 %v925
        %v927 = vpop.xlane.xlu0 %926
        %v928 = vmul.f32 %v927, %v921
        %v929 = vadd.f32 %v928, 1e-05
        %v930 = vrsqrt.pop %v929
        %v931 = vmul.f32 %v930, %v929
        %v932 = vmul.f32 %v931, %v930
        %v933 = vmul.f32 0.5, %v932
        %v934 = vsub.f32 1.5, %v933
        %v935 = vmul.f32 %v930, %v934
        %vm936 = vweird.f32 %v929
        %vm937 = vweird.f32 %v930
        %vm938 = vmor %vm936, %vm937
        %v939 = vsel %vm938, %v930, %v935
        %v940 = vmul.f32 %v923, %v939
        %v941 = vld [vmem:[%s8] sm:$0x1]
        %v943 = vperm.slane %v941, 0
        %v945 = vmul.f32 %v940, %v943
        %v946 = vld [vmem:[%s9] sm:$0x1]
        %v948 = vperm.slane %v946, 0
        %v950 = vadd.f32 %v945, %v948
        %v951 = vpack.c.bf16 %v950, %v950
        %v952 = vld [vmem:[#allocation6] sm:$0xf]
        %v953 = vld [vmem:[#allocation6 + $0x4] sm:$0xf]
        %v954 = vld [vmem:[#allocation6 + $0x8] sm:$0xf]
        %v955 = vld [vmem:[#allocation6 + $0xc] sm:$0xf]
        %v956 = vld [vmem:[%s5] sm:$0x1]
        %v958 = vperm.slane %v956, 0
        %v964 = vunpack.c.l.b16 %v952
        %v965 = vunpack.c.l.b16 %v953
        %v966 = vunpack.c.l.b16 %v954
        %v967 = vunpack.c.l.b16 %v955
        %v968 = vpack.c.b16 %v965, %v964
        %v969 = vpack.c.b16 %v967, %v966
        %v973 = vsel %vm518, %v951, 0
        %975 = vmatpush.bf16.msra.mxu0 0
        %976 = vmatpush.bf16.msra.mxu0 0
        %977 = vmatpush.bf16.msra.mxu0 0
        %978 = vmatpush.bf16.msra.mxu0 0
        %979 = vmatpush.bf16.msra.mxu0 0
        %980 = vmatpush.bf16.msra.mxu0 0
        %981 = vmatpush.bf16.msra.mxu0 %v969
        %982 = vmatpush.bf16.msra.mxu0 %v968
        %983 = vmatmul.bf16.gmra.mxu0 %v973
        %v984 = vpop.f32.mrf.mxu0
        %v985 = vadd.f32 %v958, %v984
        %v986 = vpop.f32.mrf.mxu0
        %987 = vdwg.mxu0
        %v988 = vmax.f32 %v985, 0.0
        %v989 = vpack.c.bf16 %v988, %v988
        %v990 = vld [vmem:[%s6] sm:$0xf]
        %v991 = vld [vmem:[%s6 + $0x4] sm:$0xf]
        %v992 = vld [vmem:[%s6 + $0x8] sm:$0xf]
        %v993 = vld [vmem:[%s6 + $0xc] sm:$0xf]
        %v994 = vld [vmem:[%s6 + $0x10] sm:$0xf]
        %v995 = vld [vmem:[%s6 + $0x14] sm:$0xf]
        %v996 = vld [vmem:[%s6 + $0x18] sm:$0xf]
        %v997 = vld [vmem:[%s6 + $0x1c] sm:$0xf]
        %v998 = vld [vmem:[%s7] sm:$0x1]
        %v1000 = vperm.slane %v998, 0
        %v1010 = vunpack.c.l.b16 %v990
        %v1011 = vunpack.c.l.b16 %v991
        %v1012 = vunpack.c.l.b16 %v992
        %v1013 = vunpack.c.l.b16 %v993
        %v1014 = vunpack.c.l.b16 %v994
        %v1015 = vunpack.c.l.b16 %v995
        %v1016 = vunpack.c.l.b16 %v996
        %v1017 = vunpack.c.l.b16 %v997
        %v1018 = vpack.c.b16 %v1011, %v1010
        %v1019 = vpack.c.b16 %v1013, %v1012
        %v1020 = vpack.c.b16 %v1015, %v1014
        %v1021 = vpack.c.b16 %v1017, %v1016
        %vm1026 = vcmask 523264
        %v1028 = vsel %vm1026, %v989, 0
        %1030 = vmatpush.bf16.msra.mxu0 0
        %1031 = vmatpush.bf16.msra.mxu0 0
        %1032 = vmatpush.bf16.msra.mxu0 0
        %1033 = vmatpush.bf16.msra.mxu0 0
        %1034 = vmatpush.bf16.msra.mxu0 %v1021
        %1035 = vmatpush.bf16.msra.mxu0 %v1020
        %1036 = vmatpush.bf16.msra.mxu0 %v1019
        %1037 = vmatpush.bf16.msra.mxu0 %v1018
        %1038 = vmatmul.bf16.gmra.mxu0 %v1028
        %v1039 = vpop.f32.mrf.mxu0
        %v1040 = vadd.f32 %v1000, %v1039
        %v1041 = vpop.f32.mrf.mxu0
        %1042 = vdwg.mxu0
        %v1043 = vmul.f32 %v1040, 2.0
        %v1044 = vadd.f32 %v1043, %v950
        %v1045 = vsel %vm518, %v1044, 0.0
        %1046 = vadd.xlane.f32.xlu0 %v1045
        %v1047 = vpop.xlane.xlu0 %1046
        %v1048 = vmul.f32 %v1047, %v921
        %v1049 = vsub.f32 %v1044, %v1048
        %v1050 = vmul.f32 %v1049, %v1049
        %v1051 = vsel %vm518, %v1050, 0.0
        %1052 = vadd.xlane.f32.xlu0 %v1051
        %v1053 = vpop.xlane.xlu0 %1052
        %v1054 = vmul.f32 %v1053, %v921
        %v1055 = vadd.f32 %v1054, 1e-05
        %v1056 = vrsqrt.pop %v1055
        %v1057 = vmul.f32 %v1056, %v1055
        %v1058 = vmul.f32 %v1057, %v1056
        %v1059 = vmul.f32 0.5, %v1058
        %v1060 = vsub.f32 1.5, %v1059
        %v1061 = vmul.f32 %v1056, %v1060
        %vm1062 = vweird.f32 %v1055
        %vm1063 = vweird.f32 %v1056
        %vm1064 = vmor %vm1062, %vm1063
        %v1065 = vsel %vm1064, %v1056, %v1061
        %v1066 = vmul.f32 %v1049, %v1065
        %v1067 = vld [vmem:[%s10] sm:$0x1]
        %v1069 = vperm.slane %v1067, 0
        %v1071 = vmul.f32 %v1066, %v1069
        %v1072 = vld [vmem:[%s11] sm:$0x1]
        %v1074 = vperm.slane %v1072, 0
        %v1076 = vadd.f32 %v1071, %v1074
        %1077 = vst.msk [vmem:[%s482] sm:$0xff] %vm518, %v1076
        %s1078 = sand.u32 %s303, 1
        %s1079 = scalar_lea.sflag [#allocation5], %s1078
        %s1080 = sand.u32 %s303, 1
        %s1081 = smul.addr %s1080, 8
        %s1082 = scalar_lea.vmem [#allocation8], %s1081
        %s1083 = sand.u32 %s329, 1
        %s1084 = scalar_lea.sflag [#allocation10], %s1083
        %s1085 = sand.u32 %s329, 1
        %s1086 = smul.addr %s1085, 32
        %s1087 = scalar_lea.vmem [#allocation9], %s1086
        // Predicated region
        $region77: #{tpu_custom_call.1} parent=67 // pred_check
          %p1088 = pneg %p313
        $region78: #{tpu_custom_call.1} parent=67 // pred_check_branch
          %1090 = sbr.rel (%p1088) target = $region80
        $region79: #{tpu_custom_call.1} parent=67 // pred_region
          %1092 = vsyncadd %s1079, 0
          %s1093 = smul.addr %s33, 8
          %s1094 = scalar_lea.hbm %s12, %s1093
          %s1096 = sshll.u32 %s1082, 4
          %s1097 = int_to_ptr.vmem [resolvable:$true] %s1096
          %s1098 = sshll.u32 %s1094, 4
          %s1099 = int_to_ptr.hbm [resolvable:$true] %s1098
          %1101 = dma.vmem_to_hbm [thread:$0]  %s1097, 128, %s1099, %s1079
        $region80: #{tpu_custom_call.1} parent=67 // pred_fallthru
          _
        // Predicated region
        $region81: #{tpu_custom_call.1} parent=67 // pred_check
          %p1102 = pneg %p339
        $region82: #{tpu_custom_call.1} parent=67 // pred_check_branch
          %1104 = sbr.rel (%p1102) target = $region84
        $region83: #{tpu_custom_call.1} parent=67 // pred_region
          %1106 = vsyncadd %s1084, 0
          %s1107 = smul.addr %s33, 4
          %s1108 = smul.addr %s1107, 8
          %s1109 = scalar_lea.hbm %s13, %s1108
          %s1110 = sshll.u32 %s1087, 4
          %s1111 = int_to_ptr.vmem [resolvable:$true] %s1110
          %s1112 = sshll.u32 %s1109, 4
          %s1113 = int_to_ptr.hbm [resolvable:$true] %s1112
          %1118 = dma.vmem_to_hbm [thread:$0]  %s1111, 512, %s1113, %s1084, 128, 128, 8
        $region84: #{tpu_custom_call.1} parent=67 // pred_fallthru
          _
      $region68: #{tpu_custom_call.1} parent=5 // pred_fallthru
        _
      %p1119 = scmp.le.s32.totalorder 2, %s28
      // Predicated region
      $region85: #{tpu_custom_call.1} parent=5 // pred_check
        %p1120 = pneg %p1119
      $region86: #{tpu_custom_call.1} parent=5 // pred_check_branch
        %1122 = sbr.rel (%p1120) target = $region88
      $region87: #{tpu_custom_call.1} parent=5 // pred_region
        %s1123 = ssub.s32 %s28, 2
        // Predicated region
        $region89: #{tpu_custom_call.1} parent=87 // pred_check
          %p1124 = pneg %p319
        $region90: #{tpu_custom_call.1} parent=87 // pred_check_branch
          %1126 = sbr.rel (%p1124) target = $region92
        $region91: #{tpu_custom_call.1} parent=87 // pred_region
          %s1127 = sand.u32 %s304, 1
          %s1128 = scalar_lea.sflag [#allocation5], %s1127
          %s1129 = sand.u32 %s304, 1
          %s1130 = smul.addr %s1129, 8
          %s1131 = scalar_lea.vmem [#allocation8], %s1130
          %1133 = dma.done %s1128, 128
        $region92: #{tpu_custom_call.1} parent=87 // pred_fallthru
          _
        // Predicated region
        $region93: #{tpu_custom_call.1} parent=87 // pred_check
          %p1134 = pneg %p345
        $region94: #{tpu_custom_call.1} parent=87 // pred_check_branch
          %1136 = sbr.rel (%p1134) target = $region96
        $region95: #{tpu_custom_call.1} parent=87 // pred_region
          %s1137 = sand.u32 %s330, 1
          %s1138 = scalar_lea.sflag [#allocation10], %s1137
          %s1139 = sand.u32 %s330, 1
          %s1140 = smul.addr %s1139, 32
          %s1141 = scalar_lea.vmem [#allocation9], %s1140
          %1143 = dma.done %s1138, 512
        $region96: #{tpu_custom_call.1} parent=87 // pred_fallthru
          _
      $region88: #{tpu_custom_call.1} parent=5 // pred_fallthru
        _
    $region6: #{tpu_custom_call.1} parent=1 // loop_footer
      %s32 = sadd.s32 1, %s28
    $region7: #{tpu_custom_call.1} parent=1 // loop_footer_branch
      %27 = sbr.rel target = $region3
    $region8: #{tpu_custom_call.1} parent=1 // loop_exit
      _
    %1144 = vsyncpa [#allocation4], 1
    %s1145 = scalar_lea.sflag [#allocation4], 1
    %1146 = vsyncpa %s1145, 1
    %1147 = vsyncpa [#allocation7], 1
    %1148 = vsyncpa [#allocation5], 1
    %s1149 = scalar_lea.sflag [#allocation5], 1
    %1150 = vsyncpa %s1149, 1
    %1151 = vsyncpa [#allocation10], 1
    %s1152 = scalar_lea.sflag [#allocation10], 1
    %1153 = vsyncpa %s1152, 1

</llo_original>
